<compile_context>
chip_gen: v7x
topology: tpu7x:2x2x1
jax: 0.10.0
libtpu: 0.0.40
codegen_flags: <defaults>
</compile_context>

<pallas_src>
import jax
import jax.numpy as jnp
from jax.experimental import pallas as pl
from jax.experimental.pallas import tpu as pltpu


def _se_sigmoid_mul_kernel(gate_ref, x_ref, o_ref):
    # gate_ref: (R, 1)  pre-sigmoid per-(n, c) gate, R = N*C
    # x_ref:    (R, HW) activations in native NCHW order, HW = H*W
    # o_ref:    (R, HW)
    g = jax.nn.sigmoid(gate_ref[...].astype(jnp.float32)).astype(x_ref.dtype)
    o_ref[...] = x_ref[...] * g  # (R, 1) broadcasts along the lane dim


def sigmoid_mul(x437, x433):
    """Return sigmoid(x437) * x433 in NCHW, broadcasting over H and W.

    x437: (N, C, 1, 1) pre-sigmoid gate; x433: (N, C, H, W) activations.
    Operates directly in NCHW order via free reshapes (no transposes).
    Handles any N (gate is per (n, c) row).
    """
    N, C, H, W = x433.shape
    assert x437.shape == (N, C, 1, 1)
    R, HW = N * C, H * W

    x_slab = x433.reshape(R, HW)   # free reshape: channels on sublanes
    gate = x437.reshape(R, 1)

    out = pl.pallas_call(
        _se_sigmoid_mul_kernel,
        out_shape=jax.ShapeDtypeStruct((R, HW), x433.dtype),
        grid=(1,),
        in_specs=[
            pl.BlockSpec((R, 1), lambda i: (0, 0)),
            pl.BlockSpec((R, HW), lambda i: (0, 0)),
        ],
        out_specs=pl.BlockSpec((R, HW), lambda i: (0, 0)),
        # x_slab is a dead temporary -> reuse its buffer for the output.
        input_output_aliases={1: 0},
        compiler_params=pltpu.CompilerParams(
            dimension_semantics=("arbitrary",)),
    )(gate, x_slab)

    return out.reshape(N, C, H, W)  # free reshape back to NCHW


if __name__ == "__main__":
    key = jax.random.PRNGKey(0)
    k1, k2 = jax.random.split(key)

    # Shapes implied by the module's forward.
    x433 = jax.random.normal(k1, (1, 1536, 7, 7), dtype=jnp.float32)
    x437 = jax.random.normal(k2, (1, 1536, 1, 1), dtype=jnp.float32)

    # Pure-JAX reference computed BEFORE the kernel call, so the aliased
    # activation buffer is never read after the pallas_call.
    ref = jax.block_until_ready(jax.nn.sigmoid(x437) * x433)

    out = sigmoid_mul(x437, x433)
    out = jax.block_until_ready(out)

    assert out.shape == (1, 1536, 7, 7)
    assert jnp.allclose(out, ref, atol=1e-5, rtol=1e-5)

    print("KERNEL_OK")
</pallas_src>

<mosaic_0001>
module attributes {stable_mosaic.version = 11 : i64} {
  func.func @_se_sigmoid_mul_kernel(%arg0: i32, %arg1: memref<1536x1xf32, #tpu.memory_space<vmem>>, %arg2: memref<1536x49xf32, #tpu.memory_space<vmem>>, %arg3: memref<1536x49xf32, #tpu.memory_space<vmem>>) attributes {dimension_semantics = [#tpu.dimension_semantics<arbitrary>], iteration_bounds = array<i64: 1>, scalar_prefetch = 0 : i64, scratch_operands = 0 : i64, tpu.core_type = #tpu.core_type<tc>, window_params = [{pipeline_mode = #tpu.pipeline_mode<synchronous>, transform_indices = @transform_0, window_bounds = array<i64: 1536, 1>}, {pipeline_mode = #tpu.pipeline_mode<synchronous>, transform_indices = @transform_1, window_bounds = array<i64: 1536, 49>}, {pipeline_mode = #tpu.pipeline_mode<synchronous>, transform_indices = @transform_2, window_bounds = array<i64: 1536, 49>}]} {
    %c0 = arith.constant 0 : index
    %c0_0 = arith.constant 0 : index
    %0 = vector.load %arg1[%c0, %c0_0] : memref<1536x1xf32, #tpu.memory_space<vmem>>, vector<1536x1xf32>
    %1 = arith.negf %0 : vector<1536x1xf32>
    %2 = math.exp %1 : vector<1536x1xf32>
    %cst = arith.constant 1.000000e+00 : f32
    %3 = vector.broadcast %cst : f32 to vector<1536x1xf32>
    %4 = arith.addf %3, %2 : vector<1536x1xf32>
    %5 = arith.divf %3, %4 : vector<1536x1xf32>
    %c0_1 = arith.constant 0 : index
    %c0_2 = arith.constant 0 : index
    %6 = vector.load %arg2[%c0_1, %c0_2] : memref<1536x49xf32, #tpu.memory_space<vmem>>, vector<1536x49xf32>
    %7 = vector.broadcast %5 : vector<1536x1xf32> to vector<1536x49xf32>
    %8 = arith.mulf %6, %7 : vector<1536x49xf32>
    %c0_3 = arith.constant 0 : index
    %c0_4 = arith.constant 0 : index
    %9 = vector.load %arg3[%c0_3, %c0_4] : memref<1536x49xf32, #tpu.memory_space<vmem>>, vector<1536x49xf32>
    tpu.vector_store %arg3[%c0_3, %c0_4], %8 {strides = array<i32>} : memref<1536x49xf32, #tpu.memory_space<vmem>>, vector<1536x49xf32>,
    return
  }
  func.func @transform_0(%arg0: i32) -> (i32, i32) {
    %c0_i32 = arith.constant 0 : i32
    %c0_i32_0 = arith.constant 0 : i32
    %c0_i32_1 = arith.constant 0 : i32
    return %c0_i32, %c0_i32_0 : i32, i32
  }
  func.func @transform_1(%arg0: i32) -> (i32, i32) {
    %c0_i32 = arith.constant 0 : i32
    %c0_i32_0 = arith.constant 0 : i32
    %c0_i32_1 = arith.constant 0 : i32
    return %c0_i32, %c0_i32_0 : i32, i32
  }
  func.func @transform_2(%arg0: i32) -> (i32, i32) {
    %c0_i32 = arith.constant 0 : i32
    %c0_i32_0 = arith.constant 0 : i32
    %c0_i32_1 = arith.constant 0 : i32
    return %c0_i32, %c0_i32_0 : i32, i32
  }
}

</mosaic_0001>

<llo_original>
// kernel: tpu_custom_call.1
$region0: #{tpu_custom_call.1}
  #allocation0 [shape = 'u32[]', space=smem, size = 0x4, offset = 0x4, fixed_abs, tag = 'smem constant byte address 0x4 - core index']
  #allocation1 [shape = 'u32[144,128]{1,0:T(1,128)}', space=vmem, size = 0x12000, scoped, tag = 'internal scratch']
  %s0 = inlined_call_operand.vmem [shape: f32[1536,1], index: 0, kind: input, shape index: {}]
  %s1 = inlined_call_operand.vmem [shape: f32[1536,49], index: 1, kind: input, shape index: {}, may-alias: {1,2}]
  %s2 = inlined_call_operand.vmem [shape: f32[1536,49], index: 2, kind: output, shape index: {}, may-alias: {1,2}]
  %s3 = sld [smem:[#allocation0]]
  $region18: #{tpu_custom_call.1} parent=0
    _
  %s5 = ssub.s32 1, %s3
  %s6 = scalar_select 0, %s5, %s3
  // Predicated region
  $region2: #{tpu_custom_call.1} parent=0 // pred_check
    _
  $region3: #{tpu_custom_call.1} parent=0 // pred_check_branch
    %8 = sbr.rel (0) target = $region5
  $region4: #{tpu_custom_call.1} parent=0 // pred_region
    _
  $region5: #{tpu_custom_call.1} parent=0 // pred_fallthru
    _
  // Predicated region
  $region6: #{tpu_custom_call.1} parent=0 // pred_check
    _
  $region7: #{tpu_custom_call.1} parent=0 // pred_check_branch
    %10 = sbr.rel (0) target = $region9
  $region8: #{tpu_custom_call.1} parent=0 // pred_region
    _
  $region9: #{tpu_custom_call.1} parent=0 // pred_fallthru
    _
  %v11 = vld [vmem:[%s0] sm:$0xff]
  %v12 = vld [vmem:[%s0 + $0x8] sm:$0xff]
  %v13 = vld [vmem:[%s0 + $0x10] sm:$0xff]
  %v14 = vld [vmem:[%s0 + $0x18] sm:$0xff]
  %v15 = vld [vmem:[%s0 + $0x20] sm:$0xff]
  %v16 = vld [vmem:[%s0 + $0x28] sm:$0xff]
  %v17 = vld [vmem:[%s0 + $0x30] sm:$0xff]
  %v18 = vld [vmem:[%s0 + $0x38] sm:$0xff]
  %v19 = vld [vmem:[%s0 + $0x40] sm:$0xff]
  %v20 = vld [vmem:[%s0 + $0x48] sm:$0xff]
  %v21 = vld [vmem:[%s0 + $0x50] sm:$0xff]
  %v22 = vld [vmem:[%s0 + $0x58] sm:$0xff]
  %v23 = vld [vmem:[%s0 + $0x60] sm:$0xff]
  %v24 = vld [vmem:[%s0 + $0x68] sm:$0xff]
  %v25 = vld [vmem:[%s0 + $0x70] sm:$0xff]
  %v26 = vld [vmem:[%s0 + $0x78] sm:$0xff]
  %v27 = vld [vmem:[%s0 + $0x80] sm:$0xff]
  %v28 = vld [vmem:[%s0 + $0x88] sm:$0xff]
  %v29 = vld [vmem:[%s0 + $0x90] sm:$0xff]
  %v30 = vld [vmem:[%s0 + $0x98] sm:$0xff]
  %v31 = vld [vmem:[%s0 + $0xa0] sm:$0xff]
  %v32 = vld [vmem:[%s0 + $0xa8] sm:$0xff]
  %v33 = vld [vmem:[%s0 + $0xb0] sm:$0xff]
  %v34 = vld [vmem:[%s0 + $0xb8] sm:$0xff]
  %v35 = vld [vmem:[%s0 + $0xc0] sm:$0xff]
  %v36 = vld [vmem:[%s0 + $0xc8] sm:$0xff]
  %v37 = vld [vmem:[%s0 + $0xd0] sm:$0xff]
  %v38 = vld [vmem:[%s0 + $0xd8] sm:$0xff]
  %v39 = vld [vmem:[%s0 + $0xe0] sm:$0xff]
  %v40 = vld [vmem:[%s0 + $0xe8] sm:$0xff]
  %v41 = vld [vmem:[%s0 + $0xf0] sm:$0xff]
  %v42 = vld [vmem:[%s0 + $0xf8] sm:$0xff]
  %v43 = vld [vmem:[%s0 + $0x100] sm:$0xff]
  %v44 = vld [vmem:[%s0 + $0x108] sm:$0xff]
  %v45 = vld [vmem:[%s0 + $0x110] sm:$0xff]
  %v46 = vld [vmem:[%s0 + $0x118] sm:$0xff]
  %v47 = vld [vmem:[%s0 + $0x120] sm:$0xff]
  %v48 = vld [vmem:[%s0 + $0x128] sm:$0xff]
  %v49 = vld [vmem:[%s0 + $0x130] sm:$0xff]
  %v50 = vld [vmem:[%s0 + $0x138] sm:$0xff]
  %v51 = vld [vmem:[%s0 + $0x140] sm:$0xff]
  %v52 = vld [vmem:[%s0 + $0x148] sm:$0xff]
  %v53 = vld [vmem:[%s0 + $0x150] sm:$0xff]
  %v54 = vld [vmem:[%s0 + $0x158] sm:$0xff]
  %v55 = vld [vmem:[%s0 + $0x160] sm:$0xff]
  %v56 = vld [vmem:[%s0 + $0x168] sm:$0xff]
  %v57 = vld [vmem:[%s0 + $0x170] sm:$0xff]
  %v58 = vld [vmem:[%s0 + $0x178] sm:$0xff]
  %v59 = vld [vmem:[%s0 + $0x180] sm:$0xff]
  %v60 = vld [vmem:[%s0 + $0x188] sm:$0xff]
  %v61 = vld [vmem:[%s0 + $0x190] sm:$0xff]
  %v62 = vld [vmem:[%s0 + $0x198] sm:$0xff]
  %v63 = vld [vmem:[%s0 + $0x1a0] sm:$0xff]
  %v64 = vld [vmem:[%s0 + $0x1a8] sm:$0xff]
  %v65 = vld [vmem:[%s0 + $0x1b0] sm:$0xff]
  %v66 = vld [vmem:[%s0 + $0x1b8] sm:$0xff]
  %v67 = vld [vmem:[%s0 + $0x1c0] sm:$0xff]
  %v68 = vld [vmem:[%s0 + $0x1c8] sm:$0xff]
  %v69 = vld [vmem:[%s0 + $0x1d0] sm:$0xff]
  %v70 = vld [vmem:[%s0 + $0x1d8] sm:$0xff]
  %v71 = vld [vmem:[%s0 + $0x1e0] sm:$0xff]
  %v72 = vld [vmem:[%s0 + $0x1e8] sm:$0xff]
  %v73 = vld [vmem:[%s0 + $0x1f0] sm:$0xff]
  %v74 = vld [vmem:[%s0 + $0x1f8] sm:$0xff]
  %v75 = vld [vmem:[%s0 + $0x200] sm:$0xff]
  %v76 = vld [vmem:[%s0 + $0x208] sm:$0xff]
  %v77 = vld [vmem:[%s0 + $0x210] sm:$0xff]
  %v78 = vld [vmem:[%s0 + $0x218] sm:$0xff]
  %v79 = vld [vmem:[%s0 + $0x220] sm:$0xff]
  %v80 = vld [vmem:[%s0 + $0x228] sm:$0xff]
  %v81 = vld [vmem:[%s0 + $0x230] sm:$0xff]
  %v82 = vld [vmem:[%s0 + $0x238] sm:$0xff]
  %v83 = vld [vmem:[%s0 + $0x240] sm:$0xff]
  %v84 = vld [vmem:[%s0 + $0x248] sm:$0xff]
  %v85 = vld [vmem:[%s0 + $0x250] sm:$0xff]
  %v86 = vld [vmem:[%s0 + $0x258] sm:$0xff]
  %v87 = vld [vmem:[%s0 + $0x260] sm:$0xff]
  %v88 = vld [vmem:[%s0 + $0x268] sm:$0xff]
  %v89 = vld [vmem:[%s0 + $0x270] sm:$0xff]
  %v90 = vld [vmem:[%s0 + $0x278] sm:$0xff]
  %v91 = vld [vmem:[%s0 + $0x280] sm:$0xff]
  %v92 = vld [vmem:[%s0 + $0x288] sm:$0xff]
  %v93 = vld [vmem:[%s0 + $0x290] sm:$0xff]
  %v94 = vld [vmem:[%s0 + $0x298] sm:$0xff]
  %v95 = vld [vmem:[%s0 + $0x2a0] sm:$0xff]
  %v96 = vld [vmem:[%s0 + $0x2a8] sm:$0xff]
  %v97 = vld [vmem:[%s0 + $0x2b0] sm:$0xff]
  %v98 = vld [vmem:[%s0 + $0x2b8] sm:$0xff]
  %v99 = vld [vmem:[%s0 + $0x2c0] sm:$0xff]
  %v100 = vld [vmem:[%s0 + $0x2c8] sm:$0xff]
  %v101 = vld [vmem:[%s0 + $0x2d0] sm:$0xff]
  %v102 = vld [vmem:[%s0 + $0x2d8] sm:$0xff]
  %v103 = vld [vmem:[%s0 + $0x2e0] sm:$0xff]
  %v104 = vld [vmem:[%s0 + $0x2e8] sm:$0xff]
  %v105 = vld [vmem:[%s0 + $0x2f0] sm:$0xff]
  %v106 = vld [vmem:[%s0 + $0x2f8] sm:$0xff]
  %v107 = vld [vmem:[%s0 + $0x300] sm:$0xff]
  %v108 = vld [vmem:[%s0 + $0x308] sm:$0xff]
  %v109 = vld [vmem:[%s0 + $0x310] sm:$0xff]
  %v110 = vld [vmem:[%s0 + $0x318] sm:$0xff]
  %v111 = vld [vmem:[%s0 + $0x320] sm:$0xff]
  %v112 = vld [vmem:[%s0 + $0x328] sm:$0xff]
  %v113 = vld [vmem:[%s0 + $0x330] sm:$0xff]
  %v114 = vld [vmem:[%s0 + $0x338] sm:$0xff]
  %v115 = vld [vmem:[%s0 + $0x340] sm:$0xff]
  %v116 = vld [vmem:[%s0 + $0x348] sm:$0xff]
  %v117 = vld [vmem:[%s0 + $0x350] sm:$0xff]
  %v118 = vld [vmem:[%s0 + $0x358] sm:$0xff]
  %v119 = vld [vmem:[%s0 + $0x360] sm:$0xff]
  %v120 = vld [vmem:[%s0 + $0x368] sm:$0xff]
  %v121 = vld [vmem:[%s0 + $0x370] sm:$0xff]
  %v122 = vld [vmem:[%s0 + $0x378] sm:$0xff]
  %v123 = vld [vmem:[%s0 + $0x380] sm:$0xff]
  %v124 = vld [vmem:[%s0 + $0x388] sm:$0xff]
  %v125 = vld [vmem:[%s0 + $0x390] sm:$0xff]
  %v126 = vld [vmem:[%s0 + $0x398] sm:$0xff]
  %v127 = vld [vmem:[%s0 + $0x3a0] sm:$0xff]
  %v128 = vld [vmem:[%s0 + $0x3a8] sm:$0xff]
  %v129 = vld [vmem:[%s0 + $0x3b0] sm:$0xff]
  %v130 = vld [vmem:[%s0 + $0x3b8] sm:$0xff]
  %v131 = vld [vmem:[%s0 + $0x3c0] sm:$0xff]
  %v132 = vld [vmem:[%s0 + $0x3c8] sm:$0xff]
  %v133 = vld [vmem:[%s0 + $0x3d0] sm:$0xff]
  %v134 = vld [vmem:[%s0 + $0x3d8] sm:$0xff]
  %v135 = vld [vmem:[%s0 + $0x3e0] sm:$0xff]
  %v136 = vld [vmem:[%s0 + $0x3e8] sm:$0xff]
  %v137 = vld [vmem:[%s0 + $0x3f0] sm:$0xff]
  %v138 = vld [vmem:[%s0 + $0x3f8] sm:$0xff]
  %v139 = vld [vmem:[%s0 + $0x400] sm:$0xff]
  %v140 = vld [vmem:[%s0 + $0x408] sm:$0xff]
  %v141 = vld [vmem:[%s0 + $0x410] sm:$0xff]
  %v142 = vld [vmem:[%s0 + $0x418] sm:$0xff]
  %v143 = vld [vmem:[%s0 + $0x420] sm:$0xff]
  %v144 = vld [vmem:[%s0 + $0x428] sm:$0xff]
  %v145 = vld [vmem:[%s0 + $0x430] sm:$0xff]
  %v146 = vld [vmem:[%s0 + $0x438] sm:$0xff]
  %v147 = vld [vmem:[%s0 + $0x440] sm:$0xff]
  %v148 = vld [vmem:[%s0 + $0x448] sm:$0xff]
  %v149 = vld [vmem:[%s0 + $0x450] sm:$0xff]
  %v150 = vld [vmem:[%s0 + $0x458] sm:$0xff]
  %v151 = vld [vmem:[%s0 + $0x460] sm:$0xff]
  %v152 = vld [vmem:[%s0 + $0x468] sm:$0xff]
  %v153 = vld [vmem:[%s0 + $0x470] sm:$0xff]
  %v154 = vld [vmem:[%s0 + $0x478] sm:$0xff]
  %v155 = vld [vmem:[%s0 + $0x480] sm:$0xff]
  %v156 = vld [vmem:[%s0 + $0x488] sm:$0xff]
  %v157 = vld [vmem:[%s0 + $0x490] sm:$0xff]
  %v158 = vld [vmem:[%s0 + $0x498] sm:$0xff]
  %v159 = vld [vmem:[%s0 + $0x4a0] sm:$0xff]
  %v160 = vld [vmem:[%s0 + $0x4a8] sm:$0xff]
  %v161 = vld [vmem:[%s0 + $0x4b0] sm:$0xff]
  %v162 = vld [vmem:[%s0 + $0x4b8] sm:$0xff]
  %v163 = vld [vmem:[%s0 + $0x4c0] sm:$0xff]
  %v164 = vld [vmem:[%s0 + $0x4c8] sm:$0xff]
  %v165 = vld [vmem:[%s0 + $0x4d0] sm:$0xff]
  %v166 = vld [vmem:[%s0 + $0x4d8] sm:$0xff]
  %v167 = vld [vmem:[%s0 + $0x4e0] sm:$0xff]
  %v168 = vld [vmem:[%s0 + $0x4e8] sm:$0xff]
  %v169 = vld [vmem:[%s0 + $0x4f0] sm:$0xff]
  %v170 = vld [vmem:[%s0 + $0x4f8] sm:$0xff]
  %v171 = vld [vmem:[%s0 + $0x500] sm:$0xff]
  %v172 = vld [vmem:[%s0 + $0x508] sm:$0xff]
  %v173 = vld [vmem:[%s0 + $0x510] sm:$0xff]
  %v174 = vld [vmem:[%s0 + $0x518] sm:$0xff]
  %v175 = vld [vmem:[%s0 + $0x520] sm:$0xff]
  %v176 = vld [vmem:[%s0 + $0x528] sm:$0xff]
  %v177 = vld [vmem:[%s0 + $0x530] sm:$0xff]
  %v178 = vld [vmem:[%s0 + $0x538] sm:$0xff]
  %v179 = vld [vmem:[%s0 + $0x540] sm:$0xff]
  %v180 = vld [vmem:[%s0 + $0x548] sm:$0xff]
  %v181 = vld [vmem:[%s0 + $0x550] sm:$0xff]
  %v182 = vld [vmem:[%s0 + $0x558] sm:$0xff]
  %v183 = vld [vmem:[%s0 + $0x560] sm:$0xff]
  %v184 = vld [vmem:[%s0 + $0x568] sm:$0xff]
  %v185 = vld [vmem:[%s0 + $0x570] sm:$0xff]
  %v186 = vld [vmem:[%s0 + $0x578] sm:$0xff]
  %v187 = vld [vmem:[%s0 + $0x580] sm:$0xff]
  %v188 = vld [vmem:[%s0 + $0x588] sm:$0xff]
  %v189 = vld [vmem:[%s0 + $0x590] sm:$0xff]
  %v190 = vld [vmem:[%s0 + $0x598] sm:$0xff]
  %v191 = vld [vmem:[%s0 + $0x5a0] sm:$0xff]
  %v192 = vld [vmem:[%s0 + $0x5a8] sm:$0xff]
  %v193 = vld [vmem:[%s0 + $0x5b0] sm:$0xff]
  %v194 = vld [vmem:[%s0 + $0x5b8] sm:$0xff]
  %v195 = vld [vmem:[%s0 + $0x5c0] sm:$0xff]
  %v196 = vld [vmem:[%s0 + $0x5c8] sm:$0xff]
  %v197 = vld [vmem:[%s0 + $0x5d0] sm:$0xff]
  %v198 = vld [vmem:[%s0 + $0x5d8] sm:$0xff]
  %v199 = vld [vmem:[%s0 + $0x5e0] sm:$0xff]
  %v200 = vld [vmem:[%s0 + $0x5e8] sm:$0xff]
  %v201 = vld [vmem:[%s0 + $0x5f0] sm:$0xff]
  %v202 = vld [vmem:[%s0 + $0x5f8] sm:$0xff]
  %v203 = vxor.u32 %v11, 2147483648
  %v204 = vxor.u32 %v12, 2147483648
  %v205 = vxor.u32 %v13, 2147483648
  %v206 = vxor.u32 %v14, 2147483648
  %v207 = vxor.u32 %v15, 2147483648
  %v208 = vxor.u32 %v16, 2147483648
  %v209 = vxor.u32 %v17, 2147483648
  %v210 = vxor.u32 %v18, 2147483648
  %v211 = vxor.u32 %v19, 2147483648
  %v212 = vxor.u32 %v20, 2147483648
  %v213 = vxor.u32 %v21, 2147483648
  %v214 = vxor.u32 %v22, 2147483648
  %v215 = vxor.u32 %v23, 2147483648
  %v216 = vxor.u32 %v24, 2147483648
  %v217 = vxor.u32 %v25, 2147483648
  %v218 = vxor.u32 %v26, 2147483648
  %v219 = vxor.u32 %v27, 2147483648
  %v220 = vxor.u32 %v28, 2147483648
  %v221 = vxor.u32 %v29, 2147483648
  %v222 = vxor.u32 %v30, 2147483648
  %v223 = vxor.u32 %v31, 2147483648
  %v224 = vxor.u32 %v32, 2147483648
  %v225 = vxor.u32 %v33, 2147483648
  %v226 = vxor.u32 %v34, 2147483648
  %v227 = vxor.u32 %v35, 2147483648
  %v228 = vxor.u32 %v36, 2147483648
  %v229 = vxor.u32 %v37, 2147483648
  %v230 = vxor.u32 %v38, 2147483648
  %v231 = vxor.u32 %v39, 2147483648
  %v232 = vxor.u32 %v40, 2147483648
  %v233 = vxor.u32 %v41, 2147483648
  %v234 = vxor.u32 %v42, 2147483648
  %v235 = vxor.u32 %v43, 2147483648
  %v236 = vxor.u32 %v44, 2147483648
  %v237 = vxor.u32 %v45, 2147483648
  %v238 = vxor.u32 %v46, 2147483648
  %v239 = vxor.u32 %v47, 2147483648
  %v240 = vxor.u32 %v48, 2147483648
  %v241 = vxor.u32 %v49, 2147483648
  %v242 = vxor.u32 %v50, 2147483648
  %v243 = vxor.u32 %v51, 2147483648
  %v244 = vxor.u32 %v52, 2147483648
  %v245 = vxor.u32 %v53, 2147483648
  %v246 = vxor.u32 %v54, 2147483648
  %v247 = vxor.u32 %v55, 2147483648
  %v248 = vxor.u32 %v56, 2147483648
  %v249 = vxor.u32 %v57, 2147483648
  %v250 = vxor.u32 %v58, 2147483648
  %v251 = vxor.u32 %v59, 2147483648
  %v252 = vxor.u32 %v60, 2147483648
  %v253 = vxor.u32 %v61, 2147483648
  %v254 = vxor.u32 %v62, 2147483648
  %v255 = vxor.u32 %v63, 2147483648
  %v256 = vxor.u32 %v64, 2147483648
  %v257 = vxor.u32 %v65, 2147483648
  %v258 = vxor.u32 %v66, 2147483648
  %v259 = vxor.u32 %v67, 2147483648
  %v260 = vxor.u32 %v68, 2147483648
  %v261 = vxor.u32 %v69, 2147483648
  %v262 = vxor.u32 %v70, 2147483648
  %v263 = vxor.u32 %v71, 2147483648
  %v264 = vxor.u32 %v72, 2147483648
  %v265 = vxor.u32 %v73, 2147483648
  %v266 = vxor.u32 %v74, 2147483648
  %v267 = vxor.u32 %v75, 2147483648
  %v268 = vxor.u32 %v76, 2147483648
  %v269 = vxor.u32 %v77, 2147483648
  %v270 = vxor.u32 %v78, 2147483648
  %v271 = vxor.u32 %v79, 2147483648
  %v272 = vxor.u32 %v80, 2147483648
  %v273 = vxor.u32 %v81, 2147483648
  %v274 = vxor.u32 %v82, 2147483648
  %v275 = vxor.u32 %v83, 2147483648
  %v276 = vxor.u32 %v84, 2147483648
  %v277 = vxor.u32 %v85, 2147483648
  %v278 = vxor.u32 %v86, 2147483648
  %v279 = vxor.u32 %v87, 2147483648
  %v280 = vxor.u32 %v88, 2147483648
  %v281 = vxor.u32 %v89, 2147483648
  %v282 = vxor.u32 %v90, 2147483648
  %v283 = vxor.u32 %v91, 2147483648
  %v284 = vxor.u32 %v92, 2147483648
  %v285 = vxor.u32 %v93, 2147483648
  %v286 = vxor.u32 %v94, 2147483648
  %v287 = vxor.u32 %v95, 2147483648
  %v288 = vxor.u32 %v96, 2147483648
  %v289 = vxor.u32 %v97, 2147483648
  %v290 = vxor.u32 %v98, 2147483648
  %v291 = vxor.u32 %v99, 2147483648
  %v292 = vxor.u32 %v100, 2147483648
  %v293 = vxor.u32 %v101, 2147483648
  %v294 = vxor.u32 %v102, 2147483648
  %v295 = vxor.u32 %v103, 2147483648
  %v296 = vxor.u32 %v104, 2147483648
  %v297 = vxor.u32 %v105, 2147483648
  %v298 = vxor.u32 %v106, 2147483648
  %v299 = vxor.u32 %v107, 2147483648
  %v300 = vxor.u32 %v108, 2147483648
  %v301 = vxor.u32 %v109, 2147483648
  %v302 = vxor.u32 %v110, 2147483648
  %v303 = vxor.u32 %v111, 2147483648
  %v304 = vxor.u32 %v112, 2147483648
  %v305 = vxor.u32 %v113, 2147483648
  %v306 = vxor.u32 %v114, 2147483648
  %v307 = vxor.u32 %v115, 2147483648
  %v308 = vxor.u32 %v116, 2147483648
  %v309 = vxor.u32 %v117, 2147483648
  %v310 = vxor.u32 %v118, 2147483648
  %v311 = vxor.u32 %v119, 2147483648
  %v312 = vxor.u32 %v120, 2147483648
  %v313 = vxor.u32 %v121, 2147483648
  %v314 = vxor.u32 %v122, 2147483648
  %v315 = vxor.u32 %v123, 2147483648
  %v316 = vxor.u32 %v124, 2147483648
  %v317 = vxor.u32 %v125, 2147483648
  %v318 = vxor.u32 %v126, 2147483648
  %v319 = vxor.u32 %v127, 2147483648
  %v320 = vxor.u32 %v128, 2147483648
  %v321 = vxor.u32 %v129, 2147483648
  %v322 = vxor.u32 %v130, 2147483648
  %v323 = vxor.u32 %v131, 2147483648
  %v324 = vxor.u32 %v132, 2147483648
  %v325 = vxor.u32 %v133, 2147483648
  %v326 = vxor.u32 %v134, 2147483648
  %v327 = vxor.u32 %v135, 2147483648
  %v328 = vxor.u32 %v136, 2147483648
  %v329 = vxor.u32 %v137, 2147483648
  %v330 = vxor.u32 %v138, 2147483648
  %v331 = vxor.u32 %v139, 2147483648
  %v332 = vxor.u32 %v140, 2147483648
  %v333 = vxor.u32 %v141, 2147483648
  %v334 = vxor.u32 %v142, 2147483648
  %v335 = vxor.u32 %v143, 2147483648
  %v336 = vxor.u32 %v144, 2147483648
  %v337 = vxor.u32 %v145, 2147483648
  %v338 = vxor.u32 %v146, 2147483648
  %v339 = vxor.u32 %v147, 2147483648
  %v340 = vxor.u32 %v148, 2147483648
  %v341 = vxor.u32 %v149, 2147483648
  %v342 = vxor.u32 %v150, 2147483648
  %v343 = vxor.u32 %v151, 2147483648
  %v344 = vxor.u32 %v152, 2147483648
  %v345 = vxor.u32 %v153, 2147483648
  %v346 = vxor.u32 %v154, 2147483648
  %v347 = vxor.u32 %v155, 2147483648
  %v348 = vxor.u32 %v156, 2147483648
  %v349 = vxor.u32 %v157, 2147483648
  %v350 = vxor.u32 %v158, 2147483648
  %v351 = vxor.u32 %v159, 2147483648
  %v352 = vxor.u32 %v160, 2147483648
  %v353 = vxor.u32 %v161, 2147483648
  %v354 = vxor.u32 %v162, 2147483648
  %v355 = vxor.u32 %v163, 2147483648
  %v356 = vxor.u32 %v164, 2147483648
  %v357 = vxor.u32 %v165, 2147483648
  %v358 = vxor.u32 %v166, 2147483648
  %v359 = vxor.u32 %v167, 2147483648
  %v360 = vxor.u32 %v168, 2147483648
  %v361 = vxor.u32 %v169, 2147483648
  %v362 = vxor.u32 %v170, 2147483648
  %v363 = vxor.u32 %v171, 2147483648
  %v364 = vxor.u32 %v172, 2147483648
  %v365 = vxor.u32 %v173, 2147483648
  %v366 = vxor.u32 %v174, 2147483648
  %v367 = vxor.u32 %v175, 2147483648
  %v368 = vxor.u32 %v176, 2147483648
  %v369 = vxor.u32 %v177, 2147483648
  %v370 = vxor.u32 %v178, 2147483648
  %v371 = vxor.u32 %v179, 2147483648
  %v372 = vxor.u32 %v180, 2147483648
  %v373 = vxor.u32 %v181, 2147483648
  %v374 = vxor.u32 %v182, 2147483648
  %v375 = vxor.u32 %v183, 2147483648
  %v376 = vxor.u32 %v184, 2147483648
  %v377 = vxor.u32 %v185, 2147483648
  %v378 = vxor.u32 %v186, 2147483648
  %v379 = vxor.u32 %v187, 2147483648
  %v380 = vxor.u32 %v188, 2147483648
  %v381 = vxor.u32 %v189, 2147483648
  %v382 = vxor.u32 %v190, 2147483648
  %v383 = vxor.u32 %v191, 2147483648
  %v384 = vxor.u32 %v192, 2147483648
  %v385 = vxor.u32 %v193, 2147483648
  %v386 = vxor.u32 %v194, 2147483648
  %v387 = vxor.u32 %v195, 2147483648
  %v388 = vxor.u32 %v196, 2147483648
  %v389 = vxor.u32 %v197, 2147483648
  %v390 = vxor.u32 %v198, 2147483648
  %v391 = vxor.u32 %v199, 2147483648
  %v392 = vxor.u32 %v200, 2147483648
  %v393 = vxor.u32 %v201, 2147483648
  %v394 = vxor.u32 %v202, 2147483648
  %v395 = vmul.f32 %v203, 1.442695
  %v396 = vpow.pop %v395
  %v397 = vmul.f32 %v204, 1.442695
  %v398 = vpow.pop %v397
  %v399 = vmul.f32 %v205, 1.442695
  %v400 = vpow.pop %v399
  %v401 = vmul.f32 %v206, 1.442695
  %v402 = vpow.pop %v401
  %v403 = vmul.f32 %v207, 1.442695
  %v404 = vpow.pop %v403
  %v405 = vmul.f32 %v208, 1.442695
  %v406 = vpow.pop %v405
  %v407 = vmul.f32 %v209, 1.442695
  %v408 = vpow.pop %v407
  %v409 = vmul.f32 %v210, 1.442695
  %v410 = vpow.pop %v409
  %v411 = vmul.f32 %v211, 1.442695
  %v412 = vpow.pop %v411
  %v413 = vmul.f32 %v212, 1.442695
  %v414 = vpow.pop %v413
  %v415 = vmul.f32 %v213, 1.442695
  %v416 = vpow.pop %v415
  %v417 = vmul.f32 %v214, 1.442695
  %v418 = vpow.pop %v417
  %v419 = vmul.f32 %v215, 1.442695
  %v420 = vpow.pop %v419
  %v421 = vmul.f32 %v216, 1.442695
  %v422 = vpow.pop %v421
  %v423 = vmul.f32 %v217, 1.442695
  %v424 = vpow.pop %v423
  %v425 = vmul.f32 %v218, 1.442695
  %v426 = vpow.pop %v425
  %v427 = vmul.f32 %v219, 1.442695
  %v428 = vpow.pop %v427
  %v429 = vmul.f32 %v220, 1.442695
  %v430 = vpow.pop %v429
  %v431 = vmul.f32 %v221, 1.442695
  %v432 = vpow.pop %v431
  %v433 = vmul.f32 %v222, 1.442695
  %v434 = vpow.pop %v433
  %v435 = vmul.f32 %v223, 1.442695
  %v436 = vpow.pop %v435
  %v437 = vmul.f32 %v224, 1.442695
  %v438 = vpow.pop %v437
  %v439 = vmul.f32 %v225, 1.442695
  %v440 = vpow.pop %v439
  %v441 = vmul.f32 %v226, 1.442695
  %v442 = vpow.pop %v441
  %v443 = vmul.f32 %v227, 1.442695
  %v444 = vpow.pop %v443
  %v445 = vmul.f32 %v228, 1.442695
  %v446 = vpow.pop %v445
  %v447 = vmul.f32 %v229, 1.442695
  %v448 = vpow.pop %v447
  %v449 = vmul.f32 %v230, 1.442695
  %v450 = vpow.pop %v449
  %v451 = vmul.f32 %v231, 1.442695
  %v452 = vpow.pop %v451
  %v453 = vmul.f32 %v232, 1.442695
  %v454 = vpow.pop %v453
  %v455 = vmul.f32 %v233, 1.442695
  %v456 = vpow.pop %v455
  %v457 = vmul.f32 %v234, 1.442695
  %v458 = vpow.pop %v457
  %v459 = vmul.f32 %v235, 1.442695
  %v460 = vpow.pop %v459
  %v461 = vmul.f32 %v236, 1.442695
  %v462 = vpow.pop %v461
  %v463 = vmul.f32 %v237, 1.442695
  %v464 = vpow.pop %v463
  %v465 = vmul.f32 %v238, 1.442695
  %v466 = vpow.pop %v465
  %v467 = vmul.f32 %v239, 1.442695
  %v468 = vpow.pop %v467
  %v469 = vmul.f32 %v240, 1.442695
  %v470 = vpow.pop %v469
  %v471 = vmul.f32 %v241, 1.442695
  %v472 = vpow.pop %v471
  %v473 = vmul.f32 %v242, 1.442695
  %v474 = vpow.pop %v473
  %v475 = vmul.f32 %v243, 1.442695
  %v476 = vpow.pop %v475
  %v477 = vmul.f32 %v244, 1.442695
  %v478 = vpow.pop %v477
  %v479 = vmul.f32 %v245, 1.442695
  %v480 = vpow.pop %v479
  %v481 = vmul.f32 %v246, 1.442695
  %v482 = vpow.pop %v481
  %v483 = vmul.f32 %v247, 1.442695
  %v484 = vpow.pop %v483
  %v485 = vmul.f32 %v248, 1.442695
  %v486 = vpow.pop %v485
  %v487 = vmul.f32 %v249, 1.442695
  %v488 = vpow.pop %v487
  %v489 = vmul.f32 %v250, 1.442695
  %v490 = vpow.pop %v489
  %v491 = vmul.f32 %v251, 1.442695
  %v492 = vpow.pop %v491
  %v493 = vmul.f32 %v252, 1.442695
  %v494 = vpow.pop %v493
  %v495 = vmul.f32 %v253, 1.442695
  %v496 = vpow.pop %v495
  %v497 = vmul.f32 %v254, 1.442695
  %v498 = vpow.pop %v497
  %v499 = vmul.f32 %v255, 1.442695
  %v500 = vpow.pop %v499
  %v501 = vmul.f32 %v256, 1.442695
  %v502 = vpow.pop %v501
  %v503 = vmul.f32 %v257, 1.442695
  %v504 = vpow.pop %v503
  %v505 = vmul.f32 %v258, 1.442695
  %v506 = vpow.pop %v505
  %v507 = vmul.f32 %v259, 1.442695
  %v508 = vpow.pop %v507
  %v509 = vmul.f32 %v260, 1.442695
  %v510 = vpow.pop %v509
  %v511 = vmul.f32 %v261, 1.442695
  %v512 = vpow.pop %v511
  %v513 = vmul.f32 %v262, 1.442695
  %v514 = vpow.pop %v513
  %v515 = vmul.f32 %v263, 1.442695
  %v516 = vpow.pop %v515
  %v517 = vmul.f32 %v264, 1.442695
  %v518 = vpow.pop %v517
  %v519 = vmul.f32 %v265, 1.442695
  %v520 = vpow.pop %v519
  %v521 = vmul.f32 %v266, 1.442695
  %v522 = vpow.pop %v521
  %v523 = vmul.f32 %v267, 1.442695
  %v524 = vpow.pop %v523
  %v525 = vmul.f32 %v268, 1.442695
  %v526 = vpow.pop %v525
  %v527 = vmul.f32 %v269, 1.442695
  %v528 = vpow.pop %v527
  %v529 = vmul.f32 %v270, 1.442695
  %v530 = vpow.pop %v529
  %v531 = vmul.f32 %v271, 1.442695
  %v532 = vpow.pop %v531
  %v533 = vmul.f32 %v272, 1.442695
  %v534 = vpow.pop %v533
  %v535 = vmul.f32 %v273, 1.442695
  %v536 = vpow.pop %v535
  %v537 = vmul.f32 %v274, 1.442695
  %v538 = vpow.pop %v537
  %v539 = vmul.f32 %v275, 1.442695
  %v540 = vpow.pop %v539
  %v541 = vmul.f32 %v276, 1.442695
  %v542 = vpow.pop %v541
  %v543 = vmul.f32 %v277, 1.442695
  %v544 = vpow.pop %v543
  %v545 = vmul.f32 %v278, 1.442695
  %v546 = vpow.pop %v545
  %v547 = vmul.f32 %v279, 1.442695
  %v548 = vpow.pop %v547
  %v549 = vmul.f32 %v280, 1.442695
  %v550 = vpow.pop %v549
  %v551 = vmul.f32 %v281, 1.442695
  %v552 = vpow.pop %v551
  %v553 = vmul.f32 %v282, 1.442695
  %v554 = vpow.pop %v553
  %v555 = vmul.f32 %v283, 1.442695
  %v556 = vpow.pop %v555
  %v557 = vmul.f32 %v284, 1.442695
  %v558 = vpow.pop %v557
  %v559 = vmul.f32 %v285, 1.442695
  %v560 = vpow.pop %v559
  %v561 = vmul.f32 %v286, 1.442695
  %v562 = vpow.pop %v561
  %v563 = vmul.f32 %v287, 1.442695
  %v564 = vpow.pop %v563
  %v565 = vmul.f32 %v288, 1.442695
  %v566 = vpow.pop %v565
  %v567 = vmul.f32 %v289, 1.442695
  %v568 = vpow.pop %v567
  %v569 = vmul.f32 %v290, 1.442695
  %v570 = vpow.pop %v569
  %v571 = vmul.f32 %v291, 1.442695
  %v572 = vpow.pop %v571
  %v573 = vmul.f32 %v292, 1.442695
  %v574 = vpow.pop %v573
  %v575 = vmul.f32 %v293, 1.442695
  %v576 = vpow.pop %v575
  %v577 = vmul.f32 %v294, 1.442695
  %v578 = vpow.pop %v577
  %v579 = vmul.f32 %v295, 1.442695
  %v580 = vpow.pop %v579
  %v581 = vmul.f32 %v296, 1.442695
  %v582 = vpow.pop %v581
  %v583 = vmul.f32 %v297, 1.442695
  %v584 = vpow.pop %v583
  %v585 = vmul.f32 %v298, 1.442695
  %v586 = vpow.pop %v585
  %v587 = vmul.f32 %v299, 1.442695
  %v588 = vpow.pop %v587
  %v589 = vmul.f32 %v300, 1.442695
  %v590 = vpow.pop %v589
  %v591 = vmul.f32 %v301, 1.442695
  %v592 = vpow.pop %v591
  %v593 = vmul.f32 %v302, 1.442695
  %v594 = vpow.pop %v593
  %v595 = vmul.f32 %v303, 1.442695
  %v596 = vpow.pop %v595
  %v597 = vmul.f32 %v304, 1.442695
  %v598 = vpow.pop %v597
  %v599 = vmul.f32 %v305, 1.442695
  %v600 = vpow.pop %v599
  %v601 = vmul.f32 %v306, 1.442695
  %v602 = vpow.pop %v601
  %v603 = vmul.f32 %v307, 1.442695
  %v604 = vpow.pop %v603
  %v605 = vmul.f32 %v308, 1.442695
  %v606 = vpow.pop %v605
  %v607 = vmul.f32 %v309, 1.442695
  %v608 = vpow.pop %v607
  %v609 = vmul.f32 %v310, 1.442695
  %v610 = vpow.pop %v609
  %v611 = vmul.f32 %v311, 1.442695
  %v612 = vpow.pop %v611
  %v613 = vmul.f32 %v312, 1.442695
  %v614 = vpow.pop %v613
  %v615 = vmul.f32 %v313, 1.442695
  %v616 = vpow.pop %v615
  %v617 = vmul.f32 %v314, 1.442695
  %v618 = vpow.pop %v617
  %v619 = vmul.f32 %v315, 1.442695
  %v620 = vpow.pop %v619
  %v621 = vmul.f32 %v316, 1.442695
  %v622 = vpow.pop %v621
  %v623 = vmul.f32 %v317, 1.442695
  %v624 = vpow.pop %v623
  %v625 = vmul.f32 %v318, 1.442695
  %v626 = vpow.pop %v625
  %v627 = vmul.f32 %v319, 1.442695
  %v628 = vpow.pop %v627
  %v629 = vmul.f32 %v320, 1.442695
  %v630 = vpow.pop %v629
  %v631 = vmul.f32 %v321, 1.442695
  %v632 = vpow.pop %v631
  %v633 = vmul.f32 %v322, 1.442695
  %v634 = vpow.pop %v633
  %v635 = vmul.f32 %v323, 1.442695
  %v636 = vpow.pop %v635
  %v637 = vmul.f32 %v324, 1.442695
  %v638 = vpow.pop %v637
  %v639 = vmul.f32 %v325, 1.442695
  %v640 = vpow.pop %v639
  %v641 = vmul.f32 %v326, 1.442695
  %v642 = vpow.pop %v641
  %v643 = vmul.f32 %v327, 1.442695
  %v644 = vpow.pop %v643
  %v645 = vmul.f32 %v328, 1.442695
  %v646 = vpow.pop %v645
  %v647 = vmul.f32 %v329, 1.442695
  %v648 = vpow.pop %v647
  %v649 = vmul.f32 %v330, 1.442695
  %v650 = vpow.pop %v649
  %v651 = vmul.f32 %v331, 1.442695
  %v652 = vpow.pop %v651
  %v653 = vmul.f32 %v332, 1.442695
  %v654 = vpow.pop %v653
  %v655 = vmul.f32 %v333, 1.442695
  %v656 = vpow.pop %v655
  %v657 = vmul.f32 %v334, 1.442695
  %v658 = vpow.pop %v657
  %v659 = vmul.f32 %v335, 1.442695
  %v660 = vpow.pop %v659
  %v661 = vmul.f32 %v336, 1.442695
  %v662 = vpow.pop %v661
  %v663 = vmul.f32 %v337, 1.442695
  %v664 = vpow.pop %v663
  %v665 = vmul.f32 %v338, 1.442695
  %v666 = vpow.pop %v665
  %v667 = vmul.f32 %v339, 1.442695
  %v668 = vpow.pop %v667
  %v669 = vmul.f32 %v340, 1.442695
  %v670 = vpow.pop %v669
  %v671 = vmul.f32 %v341, 1.442695
  %v672 = vpow.pop %v671
  %v673 = vmul.f32 %v342, 1.442695
  %v674 = vpow.pop %v673
  %v675 = vmul.f32 %v343, 1.442695
  %v676 = vpow.pop %v675
  %v677 = vmul.f32 %v344, 1.442695
  %v678 = vpow.pop %v677
  %v679 = vmul.f32 %v345, 1.442695
  %v680 = vpow.pop %v679
  %v681 = vmul.f32 %v346, 1.442695
  %v682 = vpow.pop %v681
  %v683 = vmul.f32 %v347, 1.442695
  %v684 = vpow.pop %v683
  %v685 = vmul.f32 %v348, 1.442695
  %v686 = vpow.pop %v685
  %v687 = vmul.f32 %v349, 1.442695
  %v688 = vpow.pop %v687
  %v689 = vmul.f32 %v350, 1.442695
  %v690 = vpow.pop %v689
  %v691 = vmul.f32 %v351, 1.442695
  %v692 = vpow.pop %v691
  %v693 = vmul.f32 %v352, 1.442695
  %v694 = vpow.pop %v693
  %v695 = vmul.f32 %v353, 1.442695
  %v696 = vpow.pop %v695
  %v697 = vmul.f32 %v354, 1.442695
  %v698 = vpow.pop %v697
  %v699 = vmul.f32 %v355, 1.442695
  %v700 = vpow.pop %v699
  %v701 = vmul.f32 %v356, 1.442695
  %v702 = vpow.pop %v701
  %v703 = vmul.f32 %v357, 1.442695
  %v704 = vpow.pop %v703
  %v705 = vmul.f32 %v358, 1.442695
  %v706 = vpow.pop %v705
  %v707 = vmul.f32 %v359, 1.442695
  %v708 = vpow.pop %v707
  %v709 = vmul.f32 %v360, 1.442695
  %v710 = vpow.pop %v709
  %v711 = vmul.f32 %v361, 1.442695
  %v712 = vpow.pop %v711
  %v713 = vmul.f32 %v362, 1.442695
  %v714 = vpow.pop %v713
  %v715 = vmul.f32 %v363, 1.442695
  %v716 = vpow.pop %v715
  %v717 = vmul.f32 %v364, 1.442695
  %v718 = vpow.pop %v717
  %v719 = vmul.f32 %v365, 1.442695
  %v720 = vpow.pop %v719
  %v721 = vmul.f32 %v366, 1.442695
  %v722 = vpow.pop %v721
  %v723 = vmul.f32 %v367, 1.442695
  %v724 = vpow.pop %v723
  %v725 = vmul.f32 %v368, 1.442695
  %v726 = vpow.pop %v725
  %v727 = vmul.f32 %v369, 1.442695
  %v728 = vpow.pop %v727
  %v729 = vmul.f32 %v370, 1.442695
  %v730 = vpow.pop %v729
  %v731 = vmul.f32 %v371, 1.442695
  %v732 = vpow.pop %v731
  %v733 = vmul.f32 %v372, 1.442695
  %v734 = vpow.pop %v733
  %v735 = vmul.f32 %v373, 1.442695
  %v736 = vpow.pop %v735
  %v737 = vmul.f32 %v374, 1.442695
  %v738 = vpow.pop %v737
  %v739 = vmul.f32 %v375, 1.442695
  %v740 = vpow.pop %v739
  %v741 = vmul.f32 %v376, 1.442695
  %v742 = vpow.pop %v741
  %v743 = vmul.f32 %v377, 1.442695
  %v744 = vpow.pop %v743
  %v745 = vmul.f32 %v378, 1.442695
  %v746 = vpow.pop %v745
  %v747 = vmul.f32 %v379, 1.442695
  %v748 = vpow.pop %v747
  %v749 = vmul.f32 %v380, 1.442695
  %v750 = vpow.pop %v749
  %v751 = vmul.f32 %v381, 1.442695
  %v752 = vpow.pop %v751
  %v753 = vmul.f32 %v382, 1.442695
  %v754 = vpow.pop %v753
  %v755 = vmul.f32 %v383, 1.442695
  %v756 = vpow.pop %v755
  %v757 = vmul.f32 %v384, 1.442695
  %v758 = vpow.pop %v757
  %v759 = vmul.f32 %v385, 1.442695
  %v760 = vpow.pop %v759
  %v761 = vmul.f32 %v386, 1.442695
  %v762 = vpow.pop %v761
  %v763 = vmul.f32 %v387, 1.442695
  %v764 = vpow.pop %v763
  %v765 = vmul.f32 %v388, 1.442695
  %v766 = vpow.pop %v765
  %v767 = vmul.f32 %v389, 1.442695
  %v768 = vpow.pop %v767
  %v769 = vmul.f32 %v390, 1.442695
  %v770 = vpow.pop %v769
  %v771 = vmul.f32 %v391, 1.442695
  %v772 = vpow.pop %v771
  %v773 = vmul.f32 %v392, 1.442695
  %v774 = vpow.pop %v773
  %v775 = vmul.f32 %v393, 1.442695
  %v776 = vpow.pop %v775
  %v777 = vmul.f32 %v394, 1.442695
  %v778 = vpow.pop %v777
  %v779 = vadd.f32 %v396, 1.0
  %v780 = vadd.f32 %v398, 1.0
  %v781 = vadd.f32 %v400, 1.0
  %v782 = vadd.f32 %v402, 1.0
  %v783 = vadd.f32 %v404, 1.0
  %v784 = vadd.f32 %v406, 1.0
  %v785 = vadd.f32 %v408, 1.0
  %v786 = vadd.f32 %v410, 1.0
  %v787 = vadd.f32 %v412, 1.0
  %v788 = vadd.f32 %v414, 1.0
  %v789 = vadd.f32 %v416, 1.0
  %v790 = vadd.f32 %v418, 1.0
  %v791 = vadd.f32 %v420, 1.0
  %v792 = vadd.f32 %v422, 1.0
  %v793 = vadd.f32 %v424, 1.0
  %v794 = vadd.f32 %v426, 1.0
  %v795 = vadd.f32 %v428, 1.0
  %v796 = vadd.f32 %v430, 1.0
  %v797 = vadd.f32 %v432, 1.0
  %v798 = vadd.f32 %v434, 1.0
  %v799 = vadd.f32 %v436, 1.0
  %v800 = vadd.f32 %v438, 1.0
  %v801 = vadd.f32 %v440, 1.0
  %v802 = vadd.f32 %v442, 1.0
  %v803 = vadd.f32 %v444, 1.0
  %v804 = vadd.f32 %v446, 1.0
  %v805 = vadd.f32 %v448, 1.0
  %v806 = vadd.f32 %v450, 1.0
  %v807 = vadd.f32 %v452, 1.0
  %v808 = vadd.f32 %v454, 1.0
  %v809 = vadd.f32 %v456, 1.0
  %v810 = vadd.f32 %v458, 1.0
  %v811 = vadd.f32 %v460, 1.0
  %v812 = vadd.f32 %v462, 1.0
  %v813 = vadd.f32 %v464, 1.0
  %v814 = vadd.f32 %v466, 1.0
  %v815 = vadd.f32 %v468, 1.0
  %v816 = vadd.f32 %v470, 1.0
  %v817 = vadd.f32 %v472, 1.0
  %v818 = vadd.f32 %v474, 1.0
  %v819 = vadd.f32 %v476, 1.0
  %v820 = vadd.f32 %v478, 1.0
  %v821 = vadd.f32 %v480, 1.0
  %v822 = vadd.f32 %v482, 1.0
  %v823 = vadd.f32 %v484, 1.0
  %v824 = vadd.f32 %v486, 1.0
  %v825 = vadd.f32 %v488, 1.0
  %v826 = vadd.f32 %v490, 1.0
  %v827 = vadd.f32 %v492, 1.0
  %v828 = vadd.f32 %v494, 1.0
  %v829 = vadd.f32 %v496, 1.0
  %v830 = vadd.f32 %v498, 1.0
  %v831 = vadd.f32 %v500, 1.0
  %v832 = vadd.f32 %v502, 1.0
  %v833 = vadd.f32 %v504, 1.0
  %v834 = vadd.f32 %v506, 1.0
  %v835 = vadd.f32 %v508, 1.0
  %v836 = vadd.f32 %v510, 1.0
  %v837 = vadd.f32 %v512, 1.0
  %v838 = vadd.f32 %v514, 1.0
  %v839 = vadd.f32 %v516, 1.0
  %v840 = vadd.f32 %v518, 1.0
  %v841 = vadd.f32 %v520, 1.0
  %v842 = vadd.f32 %v522, 1.0
  %v843 = vadd.f32 %v524, 1.0
  %v844 = vadd.f32 %v526, 1.0
  %v845 = vadd.f32 %v528, 1.0
  %v846 = vadd.f32 %v530, 1.0
  %v847 = vadd.f32 %v532, 1.0
  %v848 = vadd.f32 %v534, 1.0
  %v849 = vadd.f32 %v536, 1.0
  %v850 = vadd.f32 %v538, 1.0
  %v851 = vadd.f32 %v540, 1.0
  %v852 = vadd.f32 %v542, 1.0
  %v853 = vadd.f32 %v544, 1.0
  %v854 = vadd.f32 %v546, 1.0
  %v855 = vadd.f32 %v548, 1.0
  %v856 = vadd.f32 %v550, 1.0
  %v857 = vadd.f32 %v552, 1.0
  %v858 = vadd.f32 %v554, 1.0
  %v859 = vadd.f32 %v556, 1.0
  %v860 = vadd.f32 %v558, 1.0
  %v861 = vadd.f32 %v560, 1.0
  %v862 = vadd.f32 %v562, 1.0
  %v863 = vadd.f32 %v564, 1.0
  %v864 = vadd.f32 %v566, 1.0
  %v865 = vadd.f32 %v568, 1.0
  %v866 = vadd.f32 %v570, 1.0
  %v867 = vadd.f32 %v572, 1.0
  %v868 = vadd.f32 %v574, 1.0
  %v869 = vadd.f32 %v576, 1.0
  %v870 = vadd.f32 %v578, 1.0
  %v871 = vadd.f32 %v580, 1.0
  %v872 = vadd.f32 %v582, 1.0
  %v873 = vadd.f32 %v584, 1.0
  %v874 = vadd.f32 %v586, 1.0
  %v875 = vadd.f32 %v588, 1.0
  %v876 = vadd.f32 %v590, 1.0
  %v877 = vadd.f32 %v592, 1.0
  %v878 = vadd.f32 %v594, 1.0
  %v879 = vadd.f32 %v596, 1.0
  %v880 = vadd.f32 %v598, 1.0
  %v881 = vadd.f32 %v600, 1.0
  %v882 = vadd.f32 %v602, 1.0
  %v883 = vadd.f32 %v604, 1.0
  %v884 = vadd.f32 %v606, 1.0
  %v885 = vadd.f32 %v608, 1.0
  %v886 = vadd.f32 %v610, 1.0
  %v887 = vadd.f32 %v612, 1.0
  %v888 = vadd.f32 %v614, 1.0
  %v889 = vadd.f32 %v616, 1.0
  %v890 = vadd.f32 %v618, 1.0
  %v891 = vadd.f32 %v620, 1.0
  %v892 = vadd.f32 %v622, 1.0
  %v893 = vadd.f32 %v624, 1.0
  %v894 = vadd.f32 %v626, 1.0
  %v895 = vadd.f32 %v628, 1.0
  %v896 = vadd.f32 %v630, 1.0
  %v897 = vadd.f32 %v632, 1.0
  %v898 = vadd.f32 %v634, 1.0
  %v899 = vadd.f32 %v636, 1.0
  %v900 = vadd.f32 %v638, 1.0
  %v901 = vadd.f32 %v640, 1.0
  %v902 = vadd.f32 %v642, 1.0
  %v903 = vadd.f32 %v644, 1.0
  %v904 = vadd.f32 %v646, 1.0
  %v905 = vadd.f32 %v648, 1.0
  %v906 = vadd.f32 %v650, 1.0
  %v907 = vadd.f32 %v652, 1.0
  %v908 = vadd.f32 %v654, 1.0
  %v909 = vadd.f32 %v656, 1.0
  %v910 = vadd.f32 %v658, 1.0
  %v911 = vadd.f32 %v660, 1.0
  %v912 = vadd.f32 %v662, 1.0
  %v913 = vadd.f32 %v664, 1.0
  %v914 = vadd.f32 %v666, 1.0
  %v915 = vadd.f32 %v668, 1.0
  %v916 = vadd.f32 %v670, 1.0
  %v917 = vadd.f32 %v672, 1.0
  %v918 = vadd.f32 %v674, 1.0
  %v919 = vadd.f32 %v676, 1.0
  %v920 = vadd.f32 %v678, 1.0
  %v921 = vadd.f32 %v680, 1.0
  %v922 = vadd.f32 %v682, 1.0
  %v923 = vadd.f32 %v684, 1.0
  %v924 = vadd.f32 %v686, 1.0
  %v925 = vadd.f32 %v688, 1.0
  %v926 = vadd.f32 %v690, 1.0
  %v927 = vadd.f32 %v692, 1.0
  %v928 = vadd.f32 %v694, 1.0
  %v929 = vadd.f32 %v696, 1.0
  %v930 = vadd.f32 %v698, 1.0
  %v931 = vadd.f32 %v700, 1.0
  %v932 = vadd.f32 %v702, 1.0
  %v933 = vadd.f32 %v704, 1.0
  %v934 = vadd.f32 %v706, 1.0
  %v935 = vadd.f32 %v708, 1.0
  %v936 = vadd.f32 %v710, 1.0
  %v937 = vadd.f32 %v712, 1.0
  %v938 = vadd.f32 %v714, 1.0
  %v939 = vadd.f32 %v716, 1.0
  %v940 = vadd.f32 %v718, 1.0
  %v941 = vadd.f32 %v720, 1.0
  %v942 = vadd.f32 %v722, 1.0
  %v943 = vadd.f32 %v724, 1.0
  %v944 = vadd.f32 %v726, 1.0
  %v945 = vadd.f32 %v728, 1.0
  %v946 = vadd.f32 %v730, 1.0
  %v947 = vadd.f32 %v732, 1.0
  %v948 = vadd.f32 %v734, 1.0
  %v949 = vadd.f32 %v736, 1.0
  %v950 = vadd.f32 %v738, 1.0
  %v951 = vadd.f32 %v740, 1.0
  %v952 = vadd.f32 %v742, 1.0
  %v953 = vadd.f32 %v744, 1.0
  %v954 = vadd.f32 %v746, 1.0
  %v955 = vadd.f32 %v748, 1.0
  %v956 = vadd.f32 %v750, 1.0
  %v957 = vadd.f32 %v752, 1.0
  %v958 = vadd.f32 %v754, 1.0
  %v959 = vadd.f32 %v756, 1.0
  %v960 = vadd.f32 %v758, 1.0
  %v961 = vadd.f32 %v760, 1.0
  %v962 = vadd.f32 %v762, 1.0
  %v963 = vadd.f32 %v764, 1.0
  %v964 = vadd.f32 %v766, 1.0
  %v965 = vadd.f32 %v768, 1.0
  %v966 = vadd.f32 %v770, 1.0
  %v967 = vadd.f32 %v772, 1.0
  %v968 = vadd.f32 %v774, 1.0
  %v969 = vadd.f32 %v776, 1.0
  %v970 = vadd.f32 %v778, 1.0
  %v971 = vrcp.pop %v779
  %v972 = vmul.f32 1.0, %v971
  %v973 = vrcp.pop %v780
  %v974 = vmul.f32 1.0, %v973
  %v975 = vrcp.pop %v781
  %v976 = vmul.f32 1.0, %v975
  %v977 = vrcp.pop %v782
  %v978 = vmul.f32 1.0, %v977
  %v979 = vrcp.pop %v783
  %v980 = vmul.f32 1.0, %v979
  %v981 = vrcp.pop %v784
  %v982 = vmul.f32 1.0, %v981
  %v983 = vrcp.pop %v785
  %v984 = vmul.f32 1.0, %v983
  %v985 = vrcp.pop %v786
  %v986 = vmul.f32 1.0, %v985
  %v987 = vrcp.pop %v787
  %v988 = vmul.f32 1.0, %v987
  %v989 = vrcp.pop %v788
  %v990 = vmul.f32 1.0, %v989
  %v991 = vrcp.pop %v789
  %v992 = vmul.f32 1.0, %v991
  %v993 = vrcp.pop %v790
  %v994 = vmul.f32 1.0, %v993
  %v995 = vrcp.pop %v791
  %v996 = vmul.f32 1.0, %v995
  %v997 = vrcp.pop %v792
  %v998 = vmul.f32 1.0, %v997
  %v999 = vrcp.pop %v793
  %v1000 = vmul.f32 1.0, %v999
  %v1001 = vrcp.pop %v794
  %v1002 = vmul.f32 1.0, %v1001
  %v1003 = vrcp.pop %v795
  %v1004 = vmul.f32 1.0, %v1003
  %v1005 = vrcp.pop %v796
  %v1006 = vmul.f32 1.0, %v1005
  %v1007 = vrcp.pop %v797
  %v1008 = vmul.f32 1.0, %v1007
  %v1009 = vrcp.pop %v798
  %v1010 = vmul.f32 1.0, %v1009
  %v1011 = vrcp.pop %v799
  %v1012 = vmul.f32 1.0, %v1011
  %v1013 = vrcp.pop %v800
  %v1014 = vmul.f32 1.0, %v1013
  %v1015 = vrcp.pop %v801
  %v1016 = vmul.f32 1.0, %v1015
  %v1017 = vrcp.pop %v802
  %v1018 = vmul.f32 1.0, %v1017
  %v1019 = vrcp.pop %v803
  %v1020 = vmul.f32 1.0, %v1019
  %v1021 = vrcp.pop %v804
  %v1022 = vmul.f32 1.0, %v1021
  %v1023 = vrcp.pop %v805
  %v1024 = vmul.f32 1.0, %v1023
  %v1025 = vrcp.pop %v806
  %v1026 = vmul.f32 1.0, %v1025
  %v1027 = vrcp.pop %v807
  %v1028 = vmul.f32 1.0, %v1027
  %v1029 = vrcp.pop %v808
  %v1030 = vmul.f32 1.0, %v1029
  %v1031 = vrcp.pop %v809
  %v1032 = vmul.f32 1.0, %v1031
  %v1033 = vrcp.pop %v810
  %v1034 = vmul.f32 1.0, %v1033
  %v1035 = vrcp.pop %v811
  %v1036 = vmul.f32 1.0, %v1035
  %v1037 = vrcp.pop %v812
  %v1038 = vmul.f32 1.0, %v1037
  %v1039 = vrcp.pop %v813
  %v1040 = vmul.f32 1.0, %v1039
  %v1041 = vrcp.pop %v814
  %v1042 = vmul.f32 1.0, %v1041
  %v1043 = vrcp.pop %v815
  %v1044 = vmul.f32 1.0, %v1043
  %v1045 = vrcp.pop %v816
  %v1046 = vmul.f32 1.0, %v1045
  %v1047 = vrcp.pop %v817
  %v1048 = vmul.f32 1.0, %v1047
  %v1049 = vrcp.pop %v818
  %v1050 = vmul.f32 1.0, %v1049
  %v1051 = vrcp.pop %v819
  %v1052 = vmul.f32 1.0, %v1051
  %v1053 = vrcp.pop %v820
  %v1054 = vmul.f32 1.0, %v1053
  %v1055 = vrcp.pop %v821
  %v1056 = vmul.f32 1.0, %v1055
  %v1057 = vrcp.pop %v822
  %v1058 = vmul.f32 1.0, %v1057
  %v1059 = vrcp.pop %v823
  %v1060 = vmul.f32 1.0, %v1059
  %v1061 = vrcp.pop %v824
  %v1062 = vmul.f32 1.0, %v1061
  %v1063 = vrcp.pop %v825
  %v1064 = vmul.f32 1.0, %v1063
  %v1065 = vrcp.pop %v826
  %v1066 = vmul.f32 1.0, %v1065
  %v1067 = vrcp.pop %v827
  %v1068 = vmul.f32 1.0, %v1067
  %v1069 = vrcp.pop %v828
  %v1070 = vmul.f32 1.0, %v1069
  %v1071 = vrcp.pop %v829
  %v1072 = vmul.f32 1.0, %v1071
  %v1073 = vrcp.pop %v830
  %v1074 = vmul.f32 1.0, %v1073
  %v1075 = vrcp.pop %v831
  %v1076 = vmul.f32 1.0, %v1075
  %v1077 = vrcp.pop %v832
  %v1078 = vmul.f32 1.0, %v1077
  %v1079 = vrcp.pop %v833
  %v1080 = vmul.f32 1.0, %v1079
  %v1081 = vrcp.pop %v834
  %v1082 = vmul.f32 1.0, %v1081
  %v1083 = vrcp.pop %v835
  %v1084 = vmul.f32 1.0, %v1083
  %v1085 = vrcp.pop %v836
  %v1086 = vmul.f32 1.0, %v1085
  %v1087 = vrcp.pop %v837
  %v1088 = vmul.f32 1.0, %v1087
  %v1089 = vrcp.pop %v838
  %v1090 = vmul.f32 1.0, %v1089
  %v1091 = vrcp.pop %v839
  %v1092 = vmul.f32 1.0, %v1091
  %v1093 = vrcp.pop %v840
  %v1094 = vmul.f32 1.0, %v1093
  %v1095 = vrcp.pop %v841
  %v1096 = vmul.f32 1.0, %v1095
  %v1097 = vrcp.pop %v842
  %v1098 = vmul.f32 1.0, %v1097
  %v1099 = vrcp.pop %v843
  %v1100 = vmul.f32 1.0, %v1099
  %v1101 = vrcp.pop %v844
  %v1102 = vmul.f32 1.0, %v1101
  %v1103 = vrcp.pop %v845
  %v1104 = vmul.f32 1.0, %v1103
  %v1105 = vrcp.pop %v846
  %v1106 = vmul.f32 1.0, %v1105
  %v1107 = vrcp.pop %v847
  %v1108 = vmul.f32 1.0, %v1107
  %v1109 = vrcp.pop %v848
  %v1110 = vmul.f32 1.0, %v1109
  %v1111 = vrcp.pop %v849
  %v1112 = vmul.f32 1.0, %v1111
  %v1113 = vrcp.pop %v850
  %v1114 = vmul.f32 1.0, %v1113
  %v1115 = vrcp.pop %v851
  %v1116 = vmul.f32 1.0, %v1115
  %v1117 = vrcp.pop %v852
  %v1118 = vmul.f32 1.0, %v1117
  %v1119 = vrcp.pop %v853
  %v1120 = vmul.f32 1.0, %v1119
  %v1121 = vrcp.pop %v854
  %v1122 = vmul.f32 1.0, %v1121
  %v1123 = vrcp.pop %v855
  %v1124 = vmul.f32 1.0, %v1123
  %v1125 = vrcp.pop %v856
  %v1126 = vmul.f32 1.0, %v1125
  %v1127 = vrcp.pop %v857
  %v1128 = vmul.f32 1.0, %v1127
  %v1129 = vrcp.pop %v858
  %v1130 = vmul.f32 1.0, %v1129
  %v1131 = vrcp.pop %v859
  %v1132 = vmul.f32 1.0, %v1131
  %v1133 = vrcp.pop %v860
  %v1134 = vmul.f32 1.0, %v1133
  %v1135 = vrcp.pop %v861
  %v1136 = vmul.f32 1.0, %v1135
  %v1137 = vrcp.pop %v862
  %v1138 = vmul.f32 1.0, %v1137
  %v1139 = vrcp.pop %v863
  %v1140 = vmul.f32 1.0, %v1139
  %v1141 = vrcp.pop %v864
  %v1142 = vmul.f32 1.0, %v1141
  %v1143 = vrcp.pop %v865
  %v1144 = vmul.f32 1.0, %v1143
  %v1145 = vrcp.pop %v866
  %v1146 = vmul.f32 1.0, %v1145
  %v1147 = vrcp.pop %v867
  %v1148 = vmul.f32 1.0, %v1147
  %v1149 = vrcp.pop %v868
  %v1150 = vmul.f32 1.0, %v1149
  %v1151 = vrcp.pop %v869
  %v1152 = vmul.f32 1.0, %v1151
  %v1153 = vrcp.pop %v870
  %v1154 = vmul.f32 1.0, %v1153
  %v1155 = vrcp.pop %v871
  %v1156 = vmul.f32 1.0, %v1155
  %v1157 = vrcp.pop %v872
  %v1158 = vmul.f32 1.0, %v1157
  %v1159 = vrcp.pop %v873
  %v1160 = vmul.f32 1.0, %v1159
  %v1161 = vrcp.pop %v874
  %v1162 = vmul.f32 1.0, %v1161
  %v1163 = vrcp.pop %v875
  %v1164 = vmul.f32 1.0, %v1163
  %v1165 = vrcp.pop %v876
  %v1166 = vmul.f32 1.0, %v1165
  %v1167 = vrcp.pop %v877
  %v1168 = vmul.f32 1.0, %v1167
  %v1169 = vrcp.pop %v878
  %v1170 = vmul.f32 1.0, %v1169
  %v1171 = vrcp.pop %v879
  %v1172 = vmul.f32 1.0, %v1171
  %v1173 = vrcp.pop %v880
  %v1174 = vmul.f32 1.0, %v1173
  %v1175 = vrcp.pop %v881
  %v1176 = vmul.f32 1.0, %v1175
  %v1177 = vrcp.pop %v882
  %v1178 = vmul.f32 1.0, %v1177
  %v1179 = vrcp.pop %v883
  %v1180 = vmul.f32 1.0, %v1179
  %v1181 = vrcp.pop %v884
  %v1182 = vmul.f32 1.0, %v1181
  %v1183 = vrcp.pop %v885
  %v1184 = vmul.f32 1.0, %v1183
  %v1185 = vrcp.pop %v886
  %v1186 = vmul.f32 1.0, %v1185
  %v1187 = vrcp.pop %v887
  %v1188 = vmul.f32 1.0, %v1187
  %v1189 = vrcp.pop %v888
  %v1190 = vmul.f32 1.0, %v1189
  %v1191 = vrcp.pop %v889
  %v1192 = vmul.f32 1.0, %v1191
  %v1193 = vrcp.pop %v890
  %v1194 = vmul.f32 1.0, %v1193
  %v1195 = vrcp.pop %v891
  %v1196 = vmul.f32 1.0, %v1195
  %v1197 = vrcp.pop %v892
  %v1198 = vmul.f32 1.0, %v1197
  %v1199 = vrcp.pop %v893
  %v1200 = vmul.f32 1.0, %v1199
  %v1201 = vrcp.pop %v894
  %v1202 = vmul.f32 1.0, %v1201
  %v1203 = vrcp.pop %v895
  %v1204 = vmul.f32 1.0, %v1203
  %v1205 = vrcp.pop %v896
  %v1206 = vmul.f32 1.0, %v1205
  %v1207 = vrcp.pop %v897
  %v1208 = vmul.f32 1.0, %v1207
  %v1209 = vrcp.pop %v898
  %v1210 = vmul.f32 1.0, %v1209
  %v1211 = vrcp.pop %v899
  %v1212 = vmul.f32 1.0, %v1211
  %v1213 = vrcp.pop %v900
  %v1214 = vmul.f32 1.0, %v1213
  %v1215 = vrcp.pop %v901
  %v1216 = vmul.f32 1.0, %v1215
  %v1217 = vrcp.pop %v902
  %v1218 = vmul.f32 1.0, %v1217
  %v1219 = vrcp.pop %v903
  %v1220 = vmul.f32 1.0, %v1219
  %v1221 = vrcp.pop %v904
  %v1222 = vmul.f32 1.0, %v1221
  %v1223 = vrcp.pop %v905
  %v1224 = vmul.f32 1.0, %v1223
  %v1225 = vrcp.pop %v906
  %v1226 = vmul.f32 1.0, %v1225
  %v1227 = vrcp.pop %v907
  %v1228 = vmul.f32 1.0, %v1227
  %v1229 = vrcp.pop %v908
  %v1230 = vmul.f32 1.0, %v1229
  %v1231 = vrcp.pop %v909
  %v1232 = vmul.f32 1.0, %v1231
  %v1233 = vrcp.pop %v910
  %v1234 = vmul.f32 1.0, %v1233
  %v1235 = vrcp.pop %v911
  %v1236 = vmul.f32 1.0, %v1235
  %v1237 = vrcp.pop %v912
  %v1238 = vmul.f32 1.0, %v1237
  %v1239 = vrcp.pop %v913
  %v1240 = vmul.f32 1.0, %v1239
  %v1241 = vrcp.pop %v914
  %v1242 = vmul.f32 1.0, %v1241
  %v1243 = vrcp.pop %v915
  %v1244 = vmul.f32 1.0, %v1243
  %v1245 = vrcp.pop %v916
  %v1246 = vmul.f32 1.0, %v1245
  %v1247 = vrcp.pop %v917
  %v1248 = vmul.f32 1.0, %v1247
  %v1249 = vrcp.pop %v918
  %v1250 = vmul.f32 1.0, %v1249
  %v1251 = vrcp.pop %v919
  %v1252 = vmul.f32 1.0, %v1251
  %v1253 = vrcp.pop %v920
  %v1254 = vmul.f32 1.0, %v1253
  %v1255 = vrcp.pop %v921
  %v1256 = vmul.f32 1.0, %v1255
  %v1257 = vrcp.pop %v922
  %v1258 = vmul.f32 1.0, %v1257
  %v1259 = vrcp.pop %v923
  %v1260 = vmul.f32 1.0, %v1259
  %v1261 = vrcp.pop %v924
  %v1262 = vmul.f32 1.0, %v1261
  %v1263 = vrcp.pop %v925
  %v1264 = vmul.f32 1.0, %v1263
  %v1265 = vrcp.pop %v926
  %v1266 = vmul.f32 1.0, %v1265
  %v1267 = vrcp.pop %v927
  %v1268 = vmul.f32 1.0, %v1267
  %v1269 = vrcp.pop %v928
  %v1270 = vmul.f32 1.0, %v1269
  %v1271 = vrcp.pop %v929
  %v1272 = vmul.f32 1.0, %v1271
  %v1273 = vrcp.pop %v930
  %v1274 = vmul.f32 1.0, %v1273
  %v1275 = vrcp.pop %v931
  %v1276 = vmul.f32 1.0, %v1275
  %v1277 = vrcp.pop %v932
  %v1278 = vmul.f32 1.0, %v1277
  %v1279 = vrcp.pop %v933
  %v1280 = vmul.f32 1.0, %v1279
  %v1281 = vrcp.pop %v934
  %v1282 = vmul.f32 1.0, %v1281
  %v1283 = vrcp.pop %v935
  %v1284 = vmul.f32 1.0, %v1283
  %v1285 = vrcp.pop %v936
  %v1286 = vmul.f32 1.0, %v1285
  %v1287 = vrcp.pop %v937
  %v1288 = vmul.f32 1.0, %v1287
  %v1289 = vrcp.pop %v938
  %v1290 = vmul.f32 1.0, %v1289
  %v1291 = vrcp.pop %v939
  %v1292 = vmul.f32 1.0, %v1291
  %v1293 = vrcp.pop %v940
  %v1294 = vmul.f32 1.0, %v1293
  %v1295 = vrcp.pop %v941
  %v1296 = vmul.f32 1.0, %v1295
  %v1297 = vrcp.pop %v942
  %v1298 = vmul.f32 1.0, %v1297
  %v1299 = vrcp.pop %v943
  %v1300 = vmul.f32 1.0, %v1299
  %v1301 = vrcp.pop %v944
  %v1302 = vmul.f32 1.0, %v1301
  %v1303 = vrcp.pop %v945
  %v1304 = vmul.f32 1.0, %v1303
  %v1305 = vrcp.pop %v946
  %v1306 = vmul.f32 1.0, %v1305
  %v1307 = vrcp.pop %v947
  %v1308 = vmul.f32 1.0, %v1307
  %v1309 = vrcp.pop %v948
  %v1310 = vmul.f32 1.0, %v1309
  %v1311 = vrcp.pop %v949
  %v1312 = vmul.f32 1.0, %v1311
  %v1313 = vrcp.pop %v950
  %v1314 = vmul.f32 1.0, %v1313
  %v1315 = vrcp.pop %v951
  %v1316 = vmul.f32 1.0, %v1315
  %v1317 = vrcp.pop %v952
  %v1318 = vmul.f32 1.0, %v1317
  %v1319 = vrcp.pop %v953
  %v1320 = vmul.f32 1.0, %v1319
  %v1321 = vrcp.pop %v954
  %v1322 = vmul.f32 1.0, %v1321
  %v1323 = vrcp.pop %v955
  %v1324 = vmul.f32 1.0, %v1323
  %v1325 = vrcp.pop %v956
  %v1326 = vmul.f32 1.0, %v1325
  %v1327 = vrcp.pop %v957
  %v1328 = vmul.f32 1.0, %v1327
  %v1329 = vrcp.pop %v958
  %v1330 = vmul.f32 1.0, %v1329
  %v1331 = vrcp.pop %v959
  %v1332 = vmul.f32 1.0, %v1331
  %v1333 = vrcp.pop %v960
  %v1334 = vmul.f32 1.0, %v1333
  %v1335 = vrcp.pop %v961
  %v1336 = vmul.f32 1.0, %v1335
  %v1337 = vrcp.pop %v962
  %v1338 = vmul.f32 1.0, %v1337
  %v1339 = vrcp.pop %v963
  %v1340 = vmul.f32 1.0, %v1339
  %v1341 = vrcp.pop %v964
  %v1342 = vmul.f32 1.0, %v1341
  %v1343 = vrcp.pop %v965
  %v1344 = vmul.f32 1.0, %v1343
  %v1345 = vrcp.pop %v966
  %v1346 = vmul.f32 1.0, %v1345
  %v1347 = vrcp.pop %v967
  %v1348 = vmul.f32 1.0, %v1347
  %v1349 = vrcp.pop %v968
  %v1350 = vmul.f32 1.0, %v1349
  %v1351 = vrcp.pop %v969
  %v1352 = vmul.f32 1.0, %v1351
  %v1353 = vrcp.pop %v970
  %v1354 = vmul.f32 1.0, %v1353
  %v1355 = vld [vmem:[%s1] sm:$0xff]
  %v1356 = vld [vmem:[%s1 + $0x8] sm:$0xff]
  %v1357 = vld [vmem:[%s1 + $0x10] sm:$0xff]
  %v1358 = vld [vmem:[%s1 + $0x18] sm:$0xff]
  %v1359 = vld [vmem:[%s1 + $0x20] sm:$0xff]
  %v1360 = vld [vmem:[%s1 + $0x28] sm:$0xff]
  %v1361 = vld [vmem:[%s1 + $0x30] sm:$0xff]
  %v1362 = vld [vmem:[%s1 + $0x38] sm:$0xff]
  %v1363 = vld [vmem:[%s1 + $0x40] sm:$0xff]
  %v1364 = vld [vmem:[%s1 + $0x48] sm:$0xff]
  %v1365 = vld [vmem:[%s1 + $0x50] sm:$0xff]
  %v1366 = vld [vmem:[%s1 + $0x58] sm:$0xff]
  %v1367 = vld [vmem:[%s1 + $0x60] sm:$0xff]
  %v1368 = vld [vmem:[%s1 + $0x68] sm:$0xff]
  %v1369 = vld [vmem:[%s1 + $0x70] sm:$0xff]
  %v1370 = vld [vmem:[%s1 + $0x78] sm:$0xff]
  %v1371 = vld [vmem:[%s1 + $0x80] sm:$0xff]
  %v1372 = vld [vmem:[%s1 + $0x88] sm:$0xff]
  %v1373 = vld [vmem:[%s1 + $0x90] sm:$0xff]
  %v1374 = vld [vmem:[%s1 + $0x98] sm:$0xff]
  %v1375 = vld [vmem:[%s1 + $0xa0] sm:$0xff]
  %v1376 = vld [vmem:[%s1 + $0xa8] sm:$0xff]
  %v1377 = vld [vmem:[%s1 + $0xb0] sm:$0xff]
  %v1378 = vld [vmem:[%s1 + $0xb8] sm:$0xff]
  %v1379 = vld [vmem:[%s1 + $0xc0] sm:$0xff]
  %v1380 = vld [vmem:[%s1 + $0xc8] sm:$0xff]
  %v1381 = vld [vmem:[%s1 + $0xd0] sm:$0xff]
  %v1382 = vld [vmem:[%s1 + $0xd8] sm:$0xff]
  %v1383 = vld [vmem:[%s1 + $0xe0] sm:$0xff]
  %v1384 = vld [vmem:[%s1 + $0xe8] sm:$0xff]
  %v1385 = vld [vmem:[%s1 + $0xf0] sm:$0xff]
  %v1386 = vld [vmem:[%s1 + $0xf8] sm:$0xff]
  %v1387 = vld [vmem:[%s1 + $0x100] sm:$0xff]
  %v1388 = vld [vmem:[%s1 + $0x108] sm:$0xff]
  %v1389 = vld [vmem:[%s1 + $0x110] sm:$0xff]
  %v1390 = vld [vmem:[%s1 + $0x118] sm:$0xff]
  %v1391 = vld [vmem:[%s1 + $0x120] sm:$0xff]
  %v1392 = vld [vmem:[%s1 + $0x128] sm:$0xff]
  %v1393 = vld [vmem:[%s1 + $0x130] sm:$0xff]
  %v1394 = vld [vmem:[%s1 + $0x138] sm:$0xff]
  %v1395 = vld [vmem:[%s1 + $0x140] sm:$0xff]
  %v1396 = vld [vmem:[%s1 + $0x148] sm:$0xff]
  %v1397 = vld [vmem:[%s1 + $0x150] sm:$0xff]
  %v1398 = vld [vmem:[%s1 + $0x158] sm:$0xff]
  %v1399 = vld [vmem:[%s1 + $0x160] sm:$0xff]
  %v1400 = vld [vmem:[%s1 + $0x168] sm:$0xff]
  %v1401 = vld [vmem:[%s1 + $0x170] sm:$0xff]
  %v1402 = vld [vmem:[%s1 + $0x178] sm:$0xff]
  %v1403 = vld [vmem:[%s1 + $0x180] sm:$0xff]
  %v1404 = vld [vmem:[%s1 + $0x188] sm:$0xff]
  %v1405 = vld [vmem:[%s1 + $0x190] sm:$0xff]
  %v1406 = vld [vmem:[%s1 + $0x198] sm:$0xff]
  %v1407 = vld [vmem:[%s1 + $0x1a0] sm:$0xff]
  %v1408 = vld [vmem:[%s1 + $0x1a8] sm:$0xff]
  %v1409 = vld [vmem:[%s1 + $0x1b0] sm:$0xff]
  %v1410 = vld [vmem:[%s1 + $0x1b8] sm:$0xff]
  %v1411 = vld [vmem:[%s1 + $0x1c0] sm:$0xff]
  %v1412 = vld [vmem:[%s1 + $0x1c8] sm:$0xff]
  %v1413 = vld [vmem:[%s1 + $0x1d0] sm:$0xff]
  %v1414 = vld [vmem:[%s1 + $0x1d8] sm:$0xff]
  %v1415 = vld [vmem:[%s1 + $0x1e0] sm:$0xff]
  %v1416 = vld [vmem:[%s1 + $0x1e8] sm:$0xff]
  %v1417 = vld [vmem:[%s1 + $0x1f0] sm:$0xff]
  %v1418 = vld [vmem:[%s1 + $0x1f8] sm:$0xff]
  %v1419 = vld [vmem:[%s1 + $0x200] sm:$0xff]
  %v1420 = vld [vmem:[%s1 + $0x208] sm:$0xff]
  %v1421 = vld [vmem:[%s1 + $0x210] sm:$0xff]
  %v1422 = vld [vmem:[%s1 + $0x218] sm:$0xff]
  %v1423 = vld [vmem:[%s1 + $0x220] sm:$0xff]
  %v1424 = vld [vmem:[%s1 + $0x228] sm:$0xff]
  %v1425 = vld [vmem:[%s1 + $0x230] sm:$0xff]
  %v1426 = vld [vmem:[%s1 + $0x238] sm:$0xff]
  %v1427 = vld [vmem:[%s1 + $0x240] sm:$0xff]
  %v1428 = vld [vmem:[%s1 + $0x248] sm:$0xff]
  %v1429 = vld [vmem:[%s1 + $0x250] sm:$0xff]
  %v1430 = vld [vmem:[%s1 + $0x258] sm:$0xff]
  %v1431 = vld [vmem:[%s1 + $0x260] sm:$0xff]
  %v1432 = vld [vmem:[%s1 + $0x268] sm:$0xff]
  %v1433 = vld [vmem:[%s1 + $0x270] sm:$0xff]
  %v1434 = vld [vmem:[%s1 + $0x278] sm:$0xff]
  %v1435 = vld [vmem:[%s1 + $0x280] sm:$0xff]
  %v1436 = vld [vmem:[%s1 + $0x288] sm:$0xff]
  %v1437 = vld [vmem:[%s1 + $0x290] sm:$0xff]
  %v1438 = vld [vmem:[%s1 + $0x298] sm:$0xff]
  %v1439 = vld [vmem:[%s1 + $0x2a0] sm:$0xff]
  %v1440 = vld [vmem:[%s1 + $0x2a8] sm:$0xff]
  %v1441 = vld [vmem:[%s1 + $0x2b0] sm:$0xff]
  %v1442 = vld [vmem:[%s1 + $0x2b8] sm:$0xff]
  %v1443 = vld [vmem:[%s1 + $0x2c0] sm:$0xff]
  %v1444 = vld [vmem:[%s1 + $0x2c8] sm:$0xff]
  %v1445 = vld [vmem:[%s1 + $0x2d0] sm:$0xff]
  %v1446 = vld [vmem:[%s1 + $0x2d8] sm:$0xff]
  %v1447 = vld [vmem:[%s1 + $0x2e0] sm:$0xff]
  %v1448 = vld [vmem:[%s1 + $0x2e8] sm:$0xff]
  %v1449 = vld [vmem:[%s1 + $0x2f0] sm:$0xff]
  %v1450 = vld [vmem:[%s1 + $0x2f8] sm:$0xff]
  %v1451 = vld [vmem:[%s1 + $0x300] sm:$0xff]
  %v1452 = vld [vmem:[%s1 + $0x308] sm:$0xff]
  %v1453 = vld [vmem:[%s1 + $0x310] sm:$0xff]
  %v1454 = vld [vmem:[%s1 + $0x318] sm:$0xff]
  %v1455 = vld [vmem:[%s1 + $0x320] sm:$0xff]
  %v1456 = vld [vmem:[%s1 + $0x328] sm:$0xff]
  %v1457 = vld [vmem:[%s1 + $0x330] sm:$0xff]
  %v1458 = vld [vmem:[%s1 + $0x338] sm:$0xff]
  %v1459 = vld [vmem:[%s1 + $0x340] sm:$0xff]
  %v1460 = vld [vmem:[%s1 + $0x348] sm:$0xff]
  %v1461 = vld [vmem:[%s1 + $0x350] sm:$0xff]
  %v1462 = vld [vmem:[%s1 + $0x358] sm:$0xff]
  %v1463 = vld [vmem:[%s1 + $0x360] sm:$0xff]
  %v1464 = vld [vmem:[%s1 + $0x368] sm:$0xff]
  %v1465 = vld [vmem:[%s1 + $0x370] sm:$0xff]
  %v1466 = vld [vmem:[%s1 + $0x378] sm:$0xff]
  %v1467 = vld [vmem:[%s1 + $0x380] sm:$0xff]
  %v1468 = vld [vmem:[%s1 + $0x388] sm:$0xff]
  %v1469 = vld [vmem:[%s1 + $0x390] sm:$0xff]
  %v1470 = vld [vmem:[%s1 + $0x398] sm:$0xff]
  %v1471 = vld [vmem:[%s1 + $0x3a0] sm:$0xff]
  %v1472 = vld [vmem:[%s1 + $0x3a8] sm:$0xff]
  %v1473 = vld [vmem:[%s1 + $0x3b0] sm:$0xff]
  %v1474 = vld [vmem:[%s1 + $0x3b8] sm:$0xff]
  %v1475 = vld [vmem:[%s1 + $0x3c0] sm:$0xff]
  %v1476 = vld [vmem:[%s1 + $0x3c8] sm:$0xff]
  %v1477 = vld [vmem:[%s1 + $0x3d0] sm:$0xff]
  %v1478 = vld [vmem:[%s1 + $0x3d8] sm:$0xff]
  %v1479 = vld [vmem:[%s1 + $0x3e0] sm:$0xff]
  %v1480 = vld [vmem:[%s1 + $0x3e8] sm:$0xff]
  %v1481 = vld [vmem:[%s1 + $0x3f0] sm:$0xff]
  %v1482 = vld [vmem:[%s1 + $0x3f8] sm:$0xff]
  %v1483 = vld [vmem:[%s1 + $0x400] sm:$0xff]
  %v1484 = vld [vmem:[%s1 + $0x408] sm:$0xff]
  %v1485 = vld [vmem:[%s1 + $0x410] sm:$0xff]
  %v1486 = vld [vmem:[%s1 + $0x418] sm:$0xff]
  %v1487 = vld [vmem:[%s1 + $0x420] sm:$0xff]
  %v1488 = vld [vmem:[%s1 + $0x428] sm:$0xff]
  %v1489 = vld [vmem:[%s1 + $0x430] sm:$0xff]
  %v1490 = vld [vmem:[%s1 + $0x438] sm:$0xff]
  %v1491 = vld [vmem:[%s1 + $0x440] sm:$0xff]
  %v1492 = vld [vmem:[%s1 + $0x448] sm:$0xff]
  %v1493 = vld [vmem:[%s1 + $0x450] sm:$0xff]
  %v1494 = vld [vmem:[%s1 + $0x458] sm:$0xff]
  %v1495 = vld [vmem:[%s1 + $0x460] sm:$0xff]
  %v1496 = vld [vmem:[%s1 + $0x468] sm:$0xff]
  %v1497 = vld [vmem:[%s1 + $0x470] sm:$0xff]
  %v1498 = vld [vmem:[%s1 + $0x478] sm:$0xff]
  %v1499 = vld [vmem:[%s1 + $0x480] sm:$0xff]
  %v1500 = vld [vmem:[%s1 + $0x488] sm:$0xff]
  %v1501 = vld [vmem:[%s1 + $0x490] sm:$0xff]
  %v1502 = vld [vmem:[%s1 + $0x498] sm:$0xff]
  %v1503 = vld [vmem:[%s1 + $0x4a0] sm:$0xff]
  %v1504 = vld [vmem:[%s1 + $0x4a8] sm:$0xff]
  %v1505 = vld [vmem:[%s1 + $0x4b0] sm:$0xff]
  %v1506 = vld [vmem:[%s1 + $0x4b8] sm:$0xff]
  %v1507 = vld [vmem:[%s1 + $0x4c0] sm:$0xff]
  %v1508 = vld [vmem:[%s1 + $0x4c8] sm:$0xff]
  %v1509 = vld [vmem:[%s1 + $0x4d0] sm:$0xff]
  %v1510 = vld [vmem:[%s1 + $0x4d8] sm:$0xff]
  %v1511 = vld [vmem:[%s1 + $0x4e0] sm:$0xff]
  %v1512 = vld [vmem:[%s1 + $0x4e8] sm:$0xff]
  %v1513 = vld [vmem:[%s1 + $0x4f0] sm:$0xff]
  %v1514 = vld [vmem:[%s1 + $0x4f8] sm:$0xff]
  %v1515 = vld [vmem:[%s1 + $0x500] sm:$0xff]
  %v1516 = vld [vmem:[%s1 + $0x508] sm:$0xff]
  %v1517 = vld [vmem:[%s1 + $0x510] sm:$0xff]
  %v1518 = vld [vmem:[%s1 + $0x518] sm:$0xff]
  %v1519 = vld [vmem:[%s1 + $0x520] sm:$0xff]
  %v1520 = vld [vmem:[%s1 + $0x528] sm:$0xff]
  %v1521 = vld [vmem:[%s1 + $0x530] sm:$0xff]
  %v1522 = vld [vmem:[%s1 + $0x538] sm:$0xff]
  %v1523 = vld [vmem:[%s1 + $0x540] sm:$0xff]
  %v1524 = vld [vmem:[%s1 + $0x548] sm:$0xff]
  %v1525 = vld [vmem:[%s1 + $0x550] sm:$0xff]
  %v1526 = vld [vmem:[%s1 + $0x558] sm:$0xff]
  %v1527 = vld [vmem:[%s1 + $0x560] sm:$0xff]
  %v1528 = vld [vmem:[%s1 + $0x568] sm:$0xff]
  %v1529 = vld [vmem:[%s1 + $0x570] sm:$0xff]
  %v1530 = vld [vmem:[%s1 + $0x578] sm:$0xff]
  %v1531 = vld [vmem:[%s1 + $0x580] sm:$0xff]
  %v1532 = vld [vmem:[%s1 + $0x588] sm:$0xff]
  %v1533 = vld [vmem:[%s1 + $0x590] sm:$0xff]
  %v1534 = vld [vmem:[%s1 + $0x598] sm:$0xff]
  %v1535 = vld [vmem:[%s1 + $0x5a0] sm:$0xff]
  %v1536 = vld [vmem:[%s1 + $0x5a8] sm:$0xff]
  %v1537 = vld [vmem:[%s1 + $0x5b0] sm:$0xff]
  %v1538 = vld [vmem:[%s1 + $0x5b8] sm:$0xff]
  %v1539 = vld [vmem:[%s1 + $0x5c0] sm:$0xff]
  %v1540 = vld [vmem:[%s1 + $0x5c8] sm:$0xff]
  %v1541 = vld [vmem:[%s1 + $0x5d0] sm:$0xff]
  %v1542 = vld [vmem:[%s1 + $0x5d8] sm:$0xff]
  %v1543 = vld [vmem:[%s1 + $0x5e0] sm:$0xff]
  %v1544 = vld [vmem:[%s1 + $0x5e8] sm:$0xff]
  %v1545 = vld [vmem:[%s1 + $0x5f0] sm:$0xff]
  %v1546 = vld [vmem:[%s1 + $0x5f8] sm:$0xff]
  %1548 = vset.pattern.permute.xlu0 0
  %1549 = vperm.xlu0 %1548, %v972
  %v1550 = vpop.permute.xlu0 %1549
  %1553 = vset.pattern.permute.xlu0 0
  %1554 = vperm.xlu0 %1553, %v974
  %v1555 = vpop.permute.xlu0 %1554
  %1558 = vset.pattern.permute.xlu0 0
  %1559 = vperm.xlu0 %1558, %v976
  %v1560 = vpop.permute.xlu0 %1559
  %1563 = vset.pattern.permute.xlu0 0
  %1564 = vperm.xlu0 %1563, %v978
  %v1565 = vpop.permute.xlu0 %1564
  %1568 = vset.pattern.permute.xlu0 0
  %1569 = vperm.xlu0 %1568, %v980
  %v1570 = vpop.permute.xlu0 %1569
  %1573 = vset.pattern.permute.xlu0 0
  %1574 = vperm.xlu0 %1573, %v982
  %v1575 = vpop.permute.xlu0 %1574
  %1578 = vset.pattern.permute.xlu0 0
  %1579 = vperm.xlu0 %1578, %v984
  %v1580 = vpop.permute.xlu0 %1579
  %1583 = vset.pattern.permute.xlu0 0
  %1584 = vperm.xlu0 %1583, %v986
  %v1585 = vpop.permute.xlu0 %1584
  %1588 = vset.pattern.permute.xlu0 0
  %1589 = vperm.xlu0 %1588, %v988
  %v1590 = vpop.permute.xlu0 %1589
  %1593 = vset.pattern.permute.xlu0 0
  %1594 = vperm.xlu0 %1593, %v990
  %v1595 = vpop.permute.xlu0 %1594
  %1598 = vset.pattern.permute.xlu0 0
  %1599 = vperm.xlu0 %1598, %v992
  %v1600 = vpop.permute.xlu0 %1599
  %1603 = vset.pattern.permute.xlu0 0
  %1604 = vperm.xlu0 %1603, %v994
  %v1605 = vpop.permute.xlu0 %1604
  %1608 = vset.pattern.permute.xlu0 0
  %1609 = vperm.xlu0 %1608, %v996
  %v1610 = vpop.permute.xlu0 %1609
  %1613 = vset.pattern.permute.xlu0 0
  %1614 = vperm.xlu0 %1613, %v998
  %v1615 = vpop.permute.xlu0 %1614
  %1618 = vset.pattern.permute.xlu0 0
  %1619 = vperm.xlu0 %1618, %v1000
  %v1620 = vpop.permute.xlu0 %1619
  %1623 = vset.pattern.permute.xlu0 0
  %1624 = vperm.xlu0 %1623, %v1002
  %v1625 = vpop.permute.xlu0 %1624
  %1628 = vset.pattern.permute.xlu0 0
  %1629 = vperm.xlu0 %1628, %v1004
  %v1630 = vpop.permute.xlu0 %1629
  %1633 = vset.pattern.permute.xlu0 0
  %1634 = vperm.xlu0 %1633, %v1006
  %v1635 = vpop.permute.xlu0 %1634
  %1638 = vset.pattern.permute.xlu0 0
  %1639 = vperm.xlu0 %1638, %v1008
  %v1640 = vpop.permute.xlu0 %1639
  %1643 = vset.pattern.permute.xlu0 0
  %1644 = vperm.xlu0 %1643, %v1010
  %v1645 = vpop.permute.xlu0 %1644
  %1648 = vset.pattern.permute.xlu0 0
  %1649 = vperm.xlu0 %1648, %v1012
  %v1650 = vpop.permute.xlu0 %1649
  %1653 = vset.pattern.permute.xlu0 0
  %1654 = vperm.xlu0 %1653, %v1014
  %v1655 = vpop.permute.xlu0 %1654
  %1658 = vset.pattern.permute.xlu0 0
  %1659 = vperm.xlu0 %1658, %v1016
  %v1660 = vpop.permute.xlu0 %1659
  %1663 = vset.pattern.permute.xlu0 0
  %1664 = vperm.xlu0 %1663, %v1018
  %v1665 = vpop.permute.xlu0 %1664
  %1668 = vset.pattern.permute.xlu0 0
  %1669 = vperm.xlu0 %1668, %v1020
  %v1670 = vpop.permute.xlu0 %1669
  %1673 = vset.pattern.permute.xlu0 0
  %1674 = vperm.xlu0 %1673, %v1022
  %v1675 = vpop.permute.xlu0 %1674
  %1678 = vset.pattern.permute.xlu0 0
  %1679 = vperm.xlu0 %1678, %v1024
  %v1680 = vpop.permute.xlu0 %1679
  %1683 = vset.pattern.permute.xlu0 0
  %1684 = vperm.xlu0 %1683, %v1026
  %v1685 = vpop.permute.xlu0 %1684
  %1688 = vset.pattern.permute.xlu0 0
  %1689 = vperm.xlu0 %1688, %v1028
  %v1690 = vpop.permute.xlu0 %1689
  %1693 = vset.pattern.permute.xlu0 0
  %1694 = vperm.xlu0 %1693, %v1030
  %v1695 = vpop.permute.xlu0 %1694
  %1698 = vset.pattern.permute.xlu0 0
  %1699 = vperm.xlu0 %1698, %v1032
  %v1700 = vpop.permute.xlu0 %1699
  %1703 = vset.pattern.permute.xlu0 0
  %1704 = vperm.xlu0 %1703, %v1034
  %v1705 = vpop.permute.xlu0 %1704
  %1708 = vset.pattern.permute.xlu0 0
  %1709 = vperm.xlu0 %1708, %v1036
  %v1710 = vpop.permute.xlu0 %1709
  %1713 = vset.pattern.permute.xlu0 0
  %1714 = vperm.xlu0 %1713, %v1038
  %v1715 = vpop.permute.xlu0 %1714
  %1718 = vset.pattern.permute.xlu0 0
  %1719 = vperm.xlu0 %1718, %v1040
  %v1720 = vpop.permute.xlu0 %1719
  %1723 = vset.pattern.permute.xlu0 0
  %1724 = vperm.xlu0 %1723, %v1042
  %v1725 = vpop.permute.xlu0 %1724
  %1728 = vset.pattern.permute.xlu0 0
  %1729 = vperm.xlu0 %1728, %v1044
  %v1730 = vpop.permute.xlu0 %1729
  %1733 = vset.pattern.permute.xlu0 0
  %1734 = vperm.xlu0 %1733, %v1046
  %v1735 = vpop.permute.xlu0 %1734
  %1738 = vset.pattern.permute.xlu0 0
  %1739 = vperm.xlu0 %1738, %v1048
  %v1740 = vpop.permute.xlu0 %1739
  %1743 = vset.pattern.permute.xlu0 0
  %1744 = vperm.xlu0 %1743, %v1050
  %v1745 = vpop.permute.xlu0 %1744
  %1748 = vset.pattern.permute.xlu0 0
  %1749 = vperm.xlu0 %1748, %v1052
  %v1750 = vpop.permute.xlu0 %1749
  %1753 = vset.pattern.permute.xlu0 0
  %1754 = vperm.xlu0 %1753, %v1054
  %v1755 = vpop.permute.xlu0 %1754
  %1758 = vset.pattern.permute.xlu0 0
  %1759 = vperm.xlu0 %1758, %v1056
  %v1760 = vpop.permute.xlu0 %1759
  %1763 = vset.pattern.permute.xlu0 0
  %1764 = vperm.xlu0 %1763, %v1058
  %v1765 = vpop.permute.xlu0 %1764
  %1768 = vset.pattern.permute.xlu0 0
  %1769 = vperm.xlu0 %1768, %v1060
  %v1770 = vpop.permute.xlu0 %1769
  %1773 = vset.pattern.permute.xlu0 0
  %1774 = vperm.xlu0 %1773, %v1062
  %v1775 = vpop.permute.xlu0 %1774
  %1778 = vset.pattern.permute.xlu0 0
  %1779 = vperm.xlu0 %1778, %v1064
  %v1780 = vpop.permute.xlu0 %1779
  %1783 = vset.pattern.permute.xlu0 0
  %1784 = vperm.xlu0 %1783, %v1066
  %v1785 = vpop.permute.xlu0 %1784
  %1788 = vset.pattern.permute.xlu0 0
  %1789 = vperm.xlu0 %1788, %v1068
  %v1790 = vpop.permute.xlu0 %1789
  %1793 = vset.pattern.permute.xlu0 0
  %1794 = vperm.xlu0 %1793, %v1070
  %v1795 = vpop.permute.xlu0 %1794
  %1798 = vset.pattern.permute.xlu0 0
  %1799 = vperm.xlu0 %1798, %v1072
  %v1800 = vpop.permute.xlu0 %1799
  %1803 = vset.pattern.permute.xlu0 0
  %1804 = vperm.xlu0 %1803, %v1074
  %v1805 = vpop.permute.xlu0 %1804
  %1808 = vset.pattern.permute.xlu0 0
  %1809 = vperm.xlu0 %1808, %v1076
  %v1810 = vpop.permute.xlu0 %1809
  %1813 = vset.pattern.permute.xlu0 0
  %1814 = vperm.xlu0 %1813, %v1078
  %v1815 = vpop.permute.xlu0 %1814
  %1818 = vset.pattern.permute.xlu0 0
  %1819 = vperm.xlu0 %1818, %v1080
  %v1820 = vpop.permute.xlu0 %1819
  %1823 = vset.pattern.permute.xlu0 0
  %1824 = vperm.xlu0 %1823, %v1082
  %v1825 = vpop.permute.xlu0 %1824
  %1828 = vset.pattern.permute.xlu0 0
  %1829 = vperm.xlu0 %1828, %v1084
  %v1830 = vpop.permute.xlu0 %1829
  %1833 = vset.pattern.permute.xlu0 0
  %1834 = vperm.xlu0 %1833, %v1086
  %v1835 = vpop.permute.xlu0 %1834
  %1838 = vset.pattern.permute.xlu0 0
  %1839 = vperm.xlu0 %1838, %v1088
  %v1840 = vpop.permute.xlu0 %1839
  %1843 = vset.pattern.permute.xlu0 0
  %1844 = vperm.xlu0 %1843, %v1090
  %v1845 = vpop.permute.xlu0 %1844
  %1848 = vset.pattern.permute.xlu0 0
  %1849 = vperm.xlu0 %1848, %v1092
  %v1850 = vpop.permute.xlu0 %1849
  %1853 = vset.pattern.permute.xlu0 0
  %1854 = vperm.xlu0 %1853, %v1094
  %v1855 = vpop.permute.xlu0 %1854
  %1858 = vset.pattern.permute.xlu0 0
  %1859 = vperm.xlu0 %1858, %v1096
  %v1860 = vpop.permute.xlu0 %1859
  %1863 = vset.pattern.permute.xlu0 0
  %1864 = vperm.xlu0 %1863, %v1098
  %v1865 = vpop.permute.xlu0 %1864
  %1868 = vset.pattern.permute.xlu0 0
  %1869 = vperm.xlu0 %1868, %v1100
  %v1870 = vpop.permute.xlu0 %1869
  %1873 = vset.pattern.permute.xlu0 0
  %1874 = vperm.xlu0 %1873, %v1102
  %v1875 = vpop.permute.xlu0 %1874
  %1878 = vset.pattern.permute.xlu0 0
  %1879 = vperm.xlu0 %1878, %v1104
  %v1880 = vpop.permute.xlu0 %1879
  %1883 = vset.pattern.permute.xlu0 0
  %1884 = vperm.xlu0 %1883, %v1106
  %v1885 = vpop.permute.xlu0 %1884
  %1888 = vset.pattern.permute.xlu0 0
  %1889 = vperm.xlu0 %1888, %v1108
  %v1890 = vpop.permute.xlu0 %1889
  %1893 = vset.pattern.permute.xlu0 0
  %1894 = vperm.xlu0 %1893, %v1110
  %v1895 = vpop.permute.xlu0 %1894
  %1898 = vset.pattern.permute.xlu0 0
  %1899 = vperm.xlu0 %1898, %v1112
  %v1900 = vpop.permute.xlu0 %1899
  %1903 = vset.pattern.permute.xlu0 0
  %1904 = vperm.xlu0 %1903, %v1114
  %v1905 = vpop.permute.xlu0 %1904
  %1908 = vset.pattern.permute.xlu0 0
  %1909 = vperm.xlu0 %1908, %v1116
  %v1910 = vpop.permute.xlu0 %1909
  %1913 = vset.pattern.permute.xlu0 0
  %1914 = vperm.xlu0 %1913, %v1118
  %v1915 = vpop.permute.xlu0 %1914
  %1918 = vset.pattern.permute.xlu0 0
  %1919 = vperm.xlu0 %1918, %v1120
  %v1920 = vpop.permute.xlu0 %1919
  %1923 = vset.pattern.permute.xlu0 0
  %1924 = vperm.xlu0 %1923, %v1122
  %v1925 = vpop.permute.xlu0 %1924
  %1928 = vset.pattern.permute.xlu0 0
  %1929 = vperm.xlu0 %1928, %v1124
  %v1930 = vpop.permute.xlu0 %1929
  %1933 = vset.pattern.permute.xlu0 0
  %1934 = vperm.xlu0 %1933, %v1126
  %v1935 = vpop.permute.xlu0 %1934
  %1938 = vset.pattern.permute.xlu0 0
  %1939 = vperm.xlu0 %1938, %v1128
  %v1940 = vpop.permute.xlu0 %1939
  %1943 = vset.pattern.permute.xlu0 0
  %1944 = vperm.xlu0 %1943, %v1130
  %v1945 = vpop.permute.xlu0 %1944
  %1948 = vset.pattern.permute.xlu0 0
  %1949 = vperm.xlu0 %1948, %v1132
  %v1950 = vpop.permute.xlu0 %1949
  %1953 = vset.pattern.permute.xlu0 0
  %1954 = vperm.xlu0 %1953, %v1134
  %v1955 = vpop.permute.xlu0 %1954
  %1958 = vset.pattern.permute.xlu0 0
  %1959 = vperm.xlu0 %1958, %v1136
  %v1960 = vpop.permute.xlu0 %1959
  %1963 = vset.pattern.permute.xlu0 0
  %1964 = vperm.xlu0 %1963, %v1138
  %v1965 = vpop.permute.xlu0 %1964
  %1968 = vset.pattern.permute.xlu0 0
  %1969 = vperm.xlu0 %1968, %v1140
  %v1970 = vpop.permute.xlu0 %1969
  %1973 = vset.pattern.permute.xlu0 0
  %1974 = vperm.xlu0 %1973, %v1142
  %v1975 = vpop.permute.xlu0 %1974
  %1978 = vset.pattern.permute.xlu0 0
  %1979 = vperm.xlu0 %1978, %v1144
  %v1980 = vpop.permute.xlu0 %1979
  %1983 = vset.pattern.permute.xlu0 0
  %1984 = vperm.xlu0 %1983, %v1146
  %v1985 = vpop.permute.xlu0 %1984
  %1988 = vset.pattern.permute.xlu0 0
  %1989 = vperm.xlu0 %1988, %v1148
  %v1990 = vpop.permute.xlu0 %1989
  %1993 = vset.pattern.permute.xlu0 0
  %1994 = vperm.xlu0 %1993, %v1150
  %v1995 = vpop.permute.xlu0 %1994
  %1998 = vset.pattern.permute.xlu0 0
  %1999 = vperm.xlu0 %1998, %v1152
  %v2000 = vpop.permute.xlu0 %1999
  %2003 = vset.pattern.permute.xlu0 0
  %2004 = vperm.xlu0 %2003, %v1154
  %v2005 = vpop.permute.xlu0 %2004
  %2008 = vset.pattern.permute.xlu0 0
  %2009 = vperm.xlu0 %2008, %v1156
  %v2010 = vpop.permute.xlu0 %2009
  %2013 = vset.pattern.permute.xlu0 0
  %2014 = vperm.xlu0 %2013, %v1158
  %v2015 = vpop.permute.xlu0 %2014
  %2018 = vset.pattern.permute.xlu0 0
  %2019 = vperm.xlu0 %2018, %v1160
  %v2020 = vpop.permute.xlu0 %2019
  %2023 = vset.pattern.permute.xlu0 0
  %2024 = vperm.xlu0 %2023, %v1162
  %v2025 = vpop.permute.xlu0 %2024
  %2028 = vset.pattern.permute.xlu0 0
  %2029 = vperm.xlu0 %2028, %v1164
  %v2030 = vpop.permute.xlu0 %2029
  %2033 = vset.pattern.permute.xlu0 0
  %2034 = vperm.xlu0 %2033, %v1166
  %v2035 = vpop.permute.xlu0 %2034
  %2038 = vset.pattern.permute.xlu0 0
  %2039 = vperm.xlu0 %2038, %v1168
  %v2040 = vpop.permute.xlu0 %2039
  %2043 = vset.pattern.permute.xlu0 0
  %2044 = vperm.xlu0 %2043, %v1170
  %v2045 = vpop.permute.xlu0 %2044
  %2048 = vset.pattern.permute.xlu0 0
  %2049 = vperm.xlu0 %2048, %v1172
  %v2050 = vpop.permute.xlu0 %2049
  %2053 = vset.pattern.permute.xlu0 0
  %2054 = vperm.xlu0 %2053, %v1174
  %v2055 = vpop.permute.xlu0 %2054
  %2058 = vset.pattern.permute.xlu0 0
  %2059 = vperm.xlu0 %2058, %v1176
  %v2060 = vpop.permute.xlu0 %2059
  %2063 = vset.pattern.permute.xlu0 0
  %2064 = vperm.xlu0 %2063, %v1178
  %v2065 = vpop.permute.xlu0 %2064
  %2068 = vset.pattern.permute.xlu0 0
  %2069 = vperm.xlu0 %2068, %v1180
  %v2070 = vpop.permute.xlu0 %2069
  %2073 = vset.pattern.permute.xlu0 0
  %2074 = vperm.xlu0 %2073, %v1182
  %v2075 = vpop.permute.xlu0 %2074
  %2078 = vset.pattern.permute.xlu0 0
  %2079 = vperm.xlu0 %2078, %v1184
  %v2080 = vpop.permute.xlu0 %2079
  %2083 = vset.pattern.permute.xlu0 0
  %2084 = vperm.xlu0 %2083, %v1186
  %v2085 = vpop.permute.xlu0 %2084
  %2088 = vset.pattern.permute.xlu0 0
  %2089 = vperm.xlu0 %2088, %v1188
  %v2090 = vpop.permute.xlu0 %2089
  %2093 = vset.pattern.permute.xlu0 0
  %2094 = vperm.xlu0 %2093, %v1190
  %v2095 = vpop.permute.xlu0 %2094
  %2098 = vset.pattern.permute.xlu0 0
  %2099 = vperm.xlu0 %2098, %v1192
  %v2100 = vpop.permute.xlu0 %2099
  %2103 = vset.pattern.permute.xlu0 0
  %2104 = vperm.xlu0 %2103, %v1194
  %v2105 = vpop.permute.xlu0 %2104
  %2108 = vset.pattern.permute.xlu0 0
  %2109 = vperm.xlu0 %2108, %v1196
  %v2110 = vpop.permute.xlu0 %2109
  %2113 = vset.pattern.permute.xlu0 0
  %2114 = vperm.xlu0 %2113, %v1198
  %v2115 = vpop.permute.xlu0 %2114
  %2118 = vset.pattern.permute.xlu0 0
  %2119 = vperm.xlu0 %2118, %v1200
  %v2120 = vpop.permute.xlu0 %2119
  %2123 = vset.pattern.permute.xlu0 0
  %2124 = vperm.xlu0 %2123, %v1202
  %v2125 = vpop.permute.xlu0 %2124
  %2128 = vset.pattern.permute.xlu0 0
  %2129 = vperm.xlu0 %2128, %v1204
  %v2130 = vpop.permute.xlu0 %2129
  %2133 = vset.pattern.permute.xlu0 0
  %2134 = vperm.xlu0 %2133, %v1206
  %v2135 = vpop.permute.xlu0 %2134
  %2138 = vset.pattern.permute.xlu0 0
  %2139 = vperm.xlu0 %2138, %v1208
  %v2140 = vpop.permute.xlu0 %2139
  %2143 = vset.pattern.permute.xlu0 0
  %2144 = vperm.xlu0 %2143, %v1210
  %v2145 = vpop.permute.xlu0 %2144
  %2148 = vset.pattern.permute.xlu0 0
  %2149 = vperm.xlu0 %2148, %v1212
  %v2150 = vpop.permute.xlu0 %2149
  %2153 = vset.pattern.permute.xlu0 0
  %2154 = vperm.xlu0 %2153, %v1214
  %v2155 = vpop.permute.xlu0 %2154
  %2158 = vset.pattern.permute.xlu0 0
  %2159 = vperm.xlu0 %2158, %v1216
  %v2160 = vpop.permute.xlu0 %2159
  %2163 = vset.pattern.permute.xlu0 0
  %2164 = vperm.xlu0 %2163, %v1218
  %v2165 = vpop.permute.xlu0 %2164
  %2168 = vset.pattern.permute.xlu0 0
  %2169 = vperm.xlu0 %2168, %v1220
  %v2170 = vpop.permute.xlu0 %2169
  %2173 = vset.pattern.permute.xlu0 0
  %2174 = vperm.xlu0 %2173, %v1222
  %v2175 = vpop.permute.xlu0 %2174
  %2178 = vset.pattern.permute.xlu0 0
  %2179 = vperm.xlu0 %2178, %v1224
  %v2180 = vpop.permute.xlu0 %2179
  %2183 = vset.pattern.permute.xlu0 0
  %2184 = vperm.xlu0 %2183, %v1226
  %v2185 = vpop.permute.xlu0 %2184
  %2188 = vset.pattern.permute.xlu0 0
  %2189 = vperm.xlu0 %2188, %v1228
  %v2190 = vpop.permute.xlu0 %2189
  %2193 = vset.pattern.permute.xlu0 0
  %2194 = vperm.xlu0 %2193, %v1230
  %v2195 = vpop.permute.xlu0 %2194
  %2198 = vset.pattern.permute.xlu0 0
  %2199 = vperm.xlu0 %2198, %v1232
  %v2200 = vpop.permute.xlu0 %2199
  %2203 = vset.pattern.permute.xlu0 0
  %2204 = vperm.xlu0 %2203, %v1234
  %v2205 = vpop.permute.xlu0 %2204
  %2208 = vset.pattern.permute.xlu0 0
  %2209 = vperm.xlu0 %2208, %v1236
  %v2210 = vpop.permute.xlu0 %2209
  %2213 = vset.pattern.permute.xlu0 0
  %2214 = vperm.xlu0 %2213, %v1238
  %v2215 = vpop.permute.xlu0 %2214
  %2218 = vset.pattern.permute.xlu0 0
  %2219 = vperm.xlu0 %2218, %v1240
  %v2220 = vpop.permute.xlu0 %2219
  %2223 = vset.pattern.permute.xlu0 0
  %2224 = vperm.xlu0 %2223, %v1242
  %v2225 = vpop.permute.xlu0 %2224
  %2228 = vset.pattern.permute.xlu0 0
  %2229 = vperm.xlu0 %2228, %v1244
  %v2230 = vpop.permute.xlu0 %2229
  %2233 = vset.pattern.permute.xlu0 0
  %2234 = vperm.xlu0 %2233, %v1246
  %v2235 = vpop.permute.xlu0 %2234
  %2238 = vset.pattern.permute.xlu0 0
  %2239 = vperm.xlu0 %2238, %v1248
  %v2240 = vpop.permute.xlu0 %2239
  %2243 = vset.pattern.permute.xlu0 0
  %2244 = vperm.xlu0 %2243, %v1250
  %v2245 = vpop.permute.xlu0 %2244
  %2248 = vset.pattern.permute.xlu0 0
  %2249 = vperm.xlu0 %2248, %v1252
  %v2250 = vpop.permute.xlu0 %2249
  %2253 = vset.pattern.permute.xlu0 0
  %2254 = vperm.xlu0 %2253, %v1254
  %v2255 = vpop.permute.xlu0 %2254
  %2258 = vset.pattern.permute.xlu0 0
  %2259 = vperm.xlu0 %2258, %v1256
  %v2260 = vpop.permute.xlu0 %2259
  %2263 = vset.pattern.permute.xlu0 0
  %2264 = vperm.xlu0 %2263, %v1258
  %v2265 = vpop.permute.xlu0 %2264
  %2268 = vset.pattern.permute.xlu0 0
  %2269 = vperm.xlu0 %2268, %v1260
  %v2270 = vpop.permute.xlu0 %2269
  %2273 = vset.pattern.permute.xlu0 0
  %2274 = vperm.xlu0 %2273, %v1262
  %v2275 = vpop.permute.xlu0 %2274
  %2278 = vset.pattern.permute.xlu0 0
  %2279 = vperm.xlu0 %2278, %v1264
  %v2280 = vpop.permute.xlu0 %2279
  %2283 = vset.pattern.permute.xlu0 0
  %2284 = vperm.xlu0 %2283, %v1266
  %v2285 = vpop.permute.xlu0 %2284
  %2288 = vset.pattern.permute.xlu0 0
  %2289 = vperm.xlu0 %2288, %v1268
  %v2290 = vpop.permute.xlu0 %2289
  %2293 = vset.pattern.permute.xlu0 0
  %2294 = vperm.xlu0 %2293, %v1270
  %v2295 = vpop.permute.xlu0 %2294
  %2298 = vset.pattern.permute.xlu0 0
  %2299 = vperm.xlu0 %2298, %v1272
  %v2300 = vpop.permute.xlu0 %2299
  %2303 = vset.pattern.permute.xlu0 0
  %2304 = vperm.xlu0 %2303, %v1274
  %v2305 = vpop.permute.xlu0 %2304
  %2308 = vset.pattern.permute.xlu0 0
  %2309 = vperm.xlu0 %2308, %v1276
  %v2310 = vpop.permute.xlu0 %2309
  %2313 = vset.pattern.permute.xlu0 0
  %2314 = vperm.xlu0 %2313, %v1278
  %v2315 = vpop.permute.xlu0 %2314
  %2318 = vset.pattern.permute.xlu0 0
  %2319 = vperm.xlu0 %2318, %v1280
  %v2320 = vpop.permute.xlu0 %2319
  %2323 = vset.pattern.permute.xlu0 0
  %2324 = vperm.xlu0 %2323, %v1282
  %v2325 = vpop.permute.xlu0 %2324
  %2328 = vset.pattern.permute.xlu0 0
  %2329 = vperm.xlu0 %2328, %v1284
  %v2330 = vpop.permute.xlu0 %2329
  %2333 = vset.pattern.permute.xlu0 0
  %2334 = vperm.xlu0 %2333, %v1286
  %v2335 = vpop.permute.xlu0 %2334
  %2338 = vset.pattern.permute.xlu0 0
  %2339 = vperm.xlu0 %2338, %v1288
  %v2340 = vpop.permute.xlu0 %2339
  %2343 = vset.pattern.permute.xlu0 0
  %2344 = vperm.xlu0 %2343, %v1290
  %v2345 = vpop.permute.xlu0 %2344
  %2348 = vset.pattern.permute.xlu0 0
  %2349 = vperm.xlu0 %2348, %v1292
  %v2350 = vpop.permute.xlu0 %2349
  %2353 = vset.pattern.permute.xlu0 0
  %2354 = vperm.xlu0 %2353, %v1294
  %v2355 = vpop.permute.xlu0 %2354
  %2358 = vset.pattern.permute.xlu0 0
  %2359 = vperm.xlu0 %2358, %v1296
  %v2360 = vpop.permute.xlu0 %2359
  %2363 = vset.pattern.permute.xlu0 0
  %2364 = vperm.xlu0 %2363, %v1298
  %v2365 = vpop.permute.xlu0 %2364
  %2368 = vset.pattern.permute.xlu0 0
  %2369 = vperm.xlu0 %2368, %v1300
  %v2370 = vpop.permute.xlu0 %2369
  %2373 = vset.pattern.permute.xlu0 0
  %2374 = vperm.xlu0 %2373, %v1302
  %v2375 = vpop.permute.xlu0 %2374
  %2378 = vset.pattern.permute.xlu0 0
  %2379 = vperm.xlu0 %2378, %v1304
  %v2380 = vpop.permute.xlu0 %2379
  %2383 = vset.pattern.permute.xlu0 0
  %2384 = vperm.xlu0 %2383, %v1306
  %v2385 = vpop.permute.xlu0 %2384
  %2388 = vset.pattern.permute.xlu0 0
  %2389 = vperm.xlu0 %2388, %v1308
  %v2390 = vpop.permute.xlu0 %2389
  %2393 = vset.pattern.permute.xlu0 0
  %2394 = vperm.xlu0 %2393, %v1310
  %v2395 = vpop.permute.xlu0 %2394
  %2398 = vset.pattern.permute.xlu0 0
  %2399 = vperm.xlu0 %2398, %v1312
  %v2400 = vpop.permute.xlu0 %2399
  %2403 = vset.pattern.permute.xlu0 0
  %2404 = vperm.xlu0 %2403, %v1314
  %v2405 = vpop.permute.xlu0 %2404
  %2408 = vset.pattern.permute.xlu0 0
  %2409 = vperm.xlu0 %2408, %v1316
  %v2410 = vpop.permute.xlu0 %2409
  %2413 = vset.pattern.permute.xlu0 0
  %2414 = vperm.xlu0 %2413, %v1318
  %v2415 = vpop.permute.xlu0 %2414
  %2418 = vset.pattern.permute.xlu0 0
  %2419 = vperm.xlu0 %2418, %v1320
  %v2420 = vpop.permute.xlu0 %2419
  %2423 = vset.pattern.permute.xlu0 0
  %2424 = vperm.xlu0 %2423, %v1322
  %v2425 = vpop.permute.xlu0 %2424
  %2428 = vset.pattern.permute.xlu0 0
  %2429 = vperm.xlu0 %2428, %v1324
  %v2430 = vpop.permute.xlu0 %2429
  %2433 = vset.pattern.permute.xlu0 0
  %2434 = vperm.xlu0 %2433, %v1326
  %v2435 = vpop.permute.xlu0 %2434
  %2438 = vset.pattern.permute.xlu0 0
  %2439 = vperm.xlu0 %2438, %v1328
  %v2440 = vpop.permute.xlu0 %2439
  %2443 = vset.pattern.permute.xlu0 0
  %2444 = vperm.xlu0 %2443, %v1330
  %v2445 = vpop.permute.xlu0 %2444
  %2448 = vset.pattern.permute.xlu0 0
  %2449 = vperm.xlu0 %2448, %v1332
  %v2450 = vpop.permute.xlu0 %2449
  %2453 = vset.pattern.permute.xlu0 0
  %2454 = vperm.xlu0 %2453, %v1334
  %v2455 = vpop.permute.xlu0 %2454
  %2458 = vset.pattern.permute.xlu0 0
  %2459 = vperm.xlu0 %2458, %v1336
  %v2460 = vpop.permute.xlu0 %2459
  %2463 = vset.pattern.permute.xlu0 0
  %2464 = vperm.xlu0 %2463, %v1338
  %v2465 = vpop.permute.xlu0 %2464
  %2468 = vset.pattern.permute.xlu0 0
  %2469 = vperm.xlu0 %2468, %v1340
  %v2470 = vpop.permute.xlu0 %2469
  %2473 = vset.pattern.permute.xlu0 0
  %2474 = vperm.xlu0 %2473, %v1342
  %v2475 = vpop.permute.xlu0 %2474
  %2478 = vset.pattern.permute.xlu0 0
  %2479 = vperm.xlu0 %2478, %v1344
  %v2480 = vpop.permute.xlu0 %2479
  %2483 = vset.pattern.permute.xlu0 0
  %2484 = vperm.xlu0 %2483, %v1346
  %v2485 = vpop.permute.xlu0 %2484
  %2488 = vset.pattern.permute.xlu0 0
  %2489 = vperm.xlu0 %2488, %v1348
  %v2490 = vpop.permute.xlu0 %2489
  %2493 = vset.pattern.permute.xlu0 0
  %2494 = vperm.xlu0 %2493, %v1350
  %v2495 = vpop.permute.xlu0 %2494
  %2498 = vset.pattern.permute.xlu0 0
  %2499 = vperm.xlu0 %2498, %v1352
  %v2500 = vpop.permute.xlu0 %2499
  %2503 = vset.pattern.permute.xlu0 0
  %2504 = vperm.xlu0 %2503, %v1354
  %v2505 = vpop.permute.xlu0 %2504
  %v2507 = vmul.f32 %v1355, %v1550
  %v2508 = vmul.f32 %v1356, %v1555
  %v2509 = vmul.f32 %v1357, %v1560
  %v2510 = vmul.f32 %v1358, %v1565
  %v2511 = vmul.f32 %v1359, %v1570
  %v2512 = vmul.f32 %v1360, %v1575
  %v2513 = vmul.f32 %v1361, %v1580
  %v2514 = vmul.f32 %v1362, %v1585
  %v2515 = vmul.f32 %v1363, %v1590
  %v2516 = vmul.f32 %v1364, %v1595
  %v2517 = vmul.f32 %v1365, %v1600
  %v2518 = vmul.f32 %v1366, %v1605
  %v2519 = vmul.f32 %v1367, %v1610
  %v2520 = vmul.f32 %v1368, %v1615
  %v2521 = vmul.f32 %v1369, %v1620
  %v2522 = vmul.f32 %v1370, %v1625
  %v2523 = vmul.f32 %v1371, %v1630
  %v2524 = vmul.f32 %v1372, %v1635
  %v2525 = vmul.f32 %v1373, %v1640
  %v2526 = vmul.f32 %v1374, %v1645
  %v2527 = vmul.f32 %v1375, %v1650
  %v2528 = vmul.f32 %v1376, %v1655
  %v2529 = vmul.f32 %v1377, %v1660
  %v2530 = vmul.f32 %v1378, %v1665
  %v2531 = vmul.f32 %v1379, %v1670
  %v2532 = vmul.f32 %v1380, %v1675
  %v2533 = vmul.f32 %v1381, %v1680
  %v2534 = vmul.f32 %v1382, %v1685
  %v2535 = vmul.f32 %v1383, %v1690
  %v2536 = vmul.f32 %v1384, %v1695
  %v2537 = vmul.f32 %v1385, %v1700
  %v2538 = vmul.f32 %v1386, %v1705
  %v2539 = vmul.f32 %v1387, %v1710
  %v2540 = vmul.f32 %v1388, %v1715
  %v2541 = vmul.f32 %v1389, %v1720
  %v2542 = vmul.f32 %v1390, %v1725
  %v2543 = vmul.f32 %v1391, %v1730
  %v2544 = vmul.f32 %v1392, %v1735
  %v2545 = vmul.f32 %v1393, %v1740
  %v2546 = vmul.f32 %v1394, %v1745
  %v2547 = vmul.f32 %v1395, %v1750
  %v2548 = vmul.f32 %v1396, %v1755
  %v2549 = vmul.f32 %v1397, %v1760
  %v2550 = vmul.f32 %v1398, %v1765
  %v2551 = vmul.f32 %v1399, %v1770
  %v2552 = vmul.f32 %v1400, %v1775
  %v2553 = vmul.f32 %v1401, %v1780
  %v2554 = vmul.f32 %v1402, %v1785
  %v2555 = vmul.f32 %v1403, %v1790
  %v2556 = vmul.f32 %v1404, %v1795
  %v2557 = vmul.f32 %v1405, %v1800
  %v2558 = vmul.f32 %v1406, %v1805
  %v2559 = vmul.f32 %v1407, %v1810
  %v2560 = vmul.f32 %v1408, %v1815
  %v2561 = vmul.f32 %v1409, %v1820
  %v2562 = vmul.f32 %v1410, %v1825
  %v2563 = vmul.f32 %v1411, %v1830
  %v2564 = vmul.f32 %v1412, %v1835
  %v2565 = vmul.f32 %v1413, %v1840
  %v2566 = vmul.f32 %v1414, %v1845
  %v2567 = vmul.f32 %v1415, %v1850
  %v2568 = vmul.f32 %v1416, %v1855
  %v2569 = vmul.f32 %v1417, %v1860
  %v2570 = vmul.f32 %v1418, %v1865
  %v2571 = vmul.f32 %v1419, %v1870
  %v2572 = vmul.f32 %v1420, %v1875
  %v2573 = vmul.f32 %v1421, %v1880
  %v2574 = vmul.f32 %v1422, %v1885
  %v2575 = vmul.f32 %v1423, %v1890
  %v2576 = vmul.f32 %v1424, %v1895
  %v2577 = vmul.f32 %v1425, %v1900
  %v2578 = vmul.f32 %v1426, %v1905
  %v2579 = vmul.f32 %v1427, %v1910
  %v2580 = vmul.f32 %v1428, %v1915
  %v2581 = vmul.f32 %v1429, %v1920
  %v2582 = vmul.f32 %v1430, %v1925
  %v2583 = vmul.f32 %v1431, %v1930
  %v2584 = vmul.f32 %v1432, %v1935
  %v2585 = vmul.f32 %v1433, %v1940
  %v2586 = vmul.f32 %v1434, %v1945
  %v2587 = vmul.f32 %v1435, %v1950
  %v2588 = vmul.f32 %v1436, %v1955
  %v2589 = vmul.f32 %v1437, %v1960
  %v2590 = vmul.f32 %v1438, %v1965
  %v2591 = vmul.f32 %v1439, %v1970
  %v2592 = vmul.f32 %v1440, %v1975
  %v2593 = vmul.f32 %v1441, %v1980
  %v2594 = vmul.f32 %v1442, %v1985
  %v2595 = vmul.f32 %v1443, %v1990
  %v2596 = vmul.f32 %v1444, %v1995
  %v2597 = vmul.f32 %v1445, %v2000
  %v2598 = vmul.f32 %v1446, %v2005
  %v2599 = vmul.f32 %v1447, %v2010
  %v2600 = vmul.f32 %v1448, %v2015
  %v2601 = vmul.f32 %v1449, %v2020
  %v2602 = vmul.f32 %v1450, %v2025
  %v2603 = vmul.f32 %v1451, %v2030
  %v2604 = vmul.f32 %v1452, %v2035
  %v2605 = vmul.f32 %v1453, %v2040
  %v2606 = vmul.f32 %v1454, %v2045
  %v2607 = vmul.f32 %v1455, %v2050
  %v2608 = vmul.f32 %v1456, %v2055
  %v2609 = vmul.f32 %v1457, %v2060
  %v2610 = vmul.f32 %v1458, %v2065
  %v2611 = vmul.f32 %v1459, %v2070
  %v2612 = vmul.f32 %v1460, %v2075
  %v2613 = vmul.f32 %v1461, %v2080
  %v2614 = vmul.f32 %v1462, %v2085
  %v2615 = vmul.f32 %v1463, %v2090
  %v2616 = vmul.f32 %v1464, %v2095
  %v2617 = vmul.f32 %v1465, %v2100
  %v2618 = vmul.f32 %v1466, %v2105
  %v2619 = vmul.f32 %v1467, %v2110
  %v2620 = vmul.f32 %v1468, %v2115
  %v2621 = vmul.f32 %v1469, %v2120
  %v2622 = vmul.f32 %v1470, %v2125
  %v2623 = vmul.f32 %v1471, %v2130
  %v2624 = vmul.f32 %v1472, %v2135
  %v2625 = vmul.f32 %v1473, %v2140
  %v2626 = vmul.f32 %v1474, %v2145
  %v2627 = vmul.f32 %v1475, %v2150
  %v2628 = vmul.f32 %v1476, %v2155
  %v2629 = vmul.f32 %v1477, %v2160
  %v2630 = vmul.f32 %v1478, %v2165
  %v2631 = vmul.f32 %v1479, %v2170
  %v2632 = vmul.f32 %v1480, %v2175
  %v2633 = vmul.f32 %v1481, %v2180
  %v2634 = vmul.f32 %v1482, %v2185
  %v2635 = vmul.f32 %v1483, %v2190
  %v2636 = vmul.f32 %v1484, %v2195
  %v2637 = vmul.f32 %v1485, %v2200
  %v2638 = vmul.f32 %v1486, %v2205
  %v2639 = vmul.f32 %v1487, %v2210
  %v2640 = vmul.f32 %v1488, %v2215
  %v2641 = vmul.f32 %v1489, %v2220
  %v2642 = vmul.f32 %v1490, %v2225
  %v2643 = vmul.f32 %v1491, %v2230
  %v2644 = vmul.f32 %v1492, %v2235
  %v2645 = vmul.f32 %v1493, %v2240
  %v2646 = vmul.f32 %v1494, %v2245
  %v2647 = vmul.f32 %v1495, %v2250
  %v2648 = vmul.f32 %v1496, %v2255
  %v2649 = vmul.f32 %v1497, %v2260
  %v2650 = vmul.f32 %v1498, %v2265
  %v2651 = vmul.f32 %v1499, %v2270
  %v2652 = vmul.f32 %v1500, %v2275
  %v2653 = vmul.f32 %v1501, %v2280
  %v2654 = vmul.f32 %v1502, %v2285
  %v2655 = vmul.f32 %v1503, %v2290
  %v2656 = vmul.f32 %v1504, %v2295
  %v2657 = vmul.f32 %v1505, %v2300
  %v2658 = vmul.f32 %v1506, %v2305
  %v2659 = vmul.f32 %v1507, %v2310
  %v2660 = vmul.f32 %v1508, %v2315
  %v2661 = vmul.f32 %v1509, %v2320
  %v2662 = vmul.f32 %v1510, %v2325
  %v2663 = vmul.f32 %v1511, %v2330
  %v2664 = vmul.f32 %v1512, %v2335
  %v2665 = vmul.f32 %v1513, %v2340
  %v2666 = vmul.f32 %v1514, %v2345
  %v2667 = vmul.f32 %v1515, %v2350
  %v2668 = vmul.f32 %v1516, %v2355
  %v2669 = vmul.f32 %v1517, %v2360
  %v2670 = vmul.f32 %v1518, %v2365
  %v2671 = vmul.f32 %v1519, %v2370
  %v2672 = vmul.f32 %v1520, %v2375
  %v2673 = vmul.f32 %v1521, %v2380
  %v2674 = vmul.f32 %v1522, %v2385
  %v2675 = vmul.f32 %v1523, %v2390
  %v2676 = vmul.f32 %v1524, %v2395
  %v2677 = vmul.f32 %v1525, %v2400
  %v2678 = vmul.f32 %v1526, %v2405
  %v2679 = vmul.f32 %v1527, %v2410
  %v2680 = vmul.f32 %v1528, %v2415
  %v2681 = vmul.f32 %v1529, %v2420
  %v2682 = vmul.f32 %v1530, %v2425
  %v2683 = vmul.f32 %v1531, %v2430
  %v2684 = vmul.f32 %v1532, %v2435
  %v2685 = vmul.f32 %v1533, %v2440
  %v2686 = vmul.f32 %v1534, %v2445
  %v2687 = vmul.f32 %v1535, %v2450
  %v2688 = vmul.f32 %v1536, %v2455
  %v2689 = vmul.f32 %v1537, %v2460
  %v2690 = vmul.f32 %v1538, %v2465
  %v2691 = vmul.f32 %v1539, %v2470
  %v2692 = vmul.f32 %v1540, %v2475
  %v2693 = vmul.f32 %v1541, %v2480
  %v2694 = vmul.f32 %v1542, %v2485
  %v2695 = vmul.f32 %v1543, %v2490
  %v2696 = vmul.f32 %v1544, %v2495
  %v2697 = vmul.f32 %v1545, %v2500
  %v2698 = vmul.f32 %v1546, %v2505
  %vm2699 = vcmask 400384
  %2700 = vst.msk [vmem:[%s2] sm:$0xff] %vm2699, %v2507
  %2701 = vst.msk [vmem:[%s2 + $0x8] sm:$0xff] %vm2699, %v2508
  %2702 = vst.msk [vmem:[%s2 + $0x10] sm:$0xff] %vm2699, %v2509
  %2703 = vst.msk [vmem:[%s2 + $0x18] sm:$0xff] %vm2699, %v2510
  %2704 = vst.msk [vmem:[%s2 + $0x20] sm:$0xff] %vm2699, %v2511
  %2705 = vst.msk [vmem:[%s2 + $0x28] sm:$0xff] %vm2699, %v2512
  %2706 = vst.msk [vmem:[%s2 + $0x30] sm:$0xff] %vm2699, %v2513
  %2707 = vst.msk [vmem:[%s2 + $0x38] sm:$0xff] %vm2699, %v2514
  %2708 = vst.msk [vmem:[%s2 + $0x40] sm:$0xff] %vm2699, %v2515
  %2709 = vst.msk [vmem:[%s2 + $0x48] sm:$0xff] %vm2699, %v2516
  %2710 = vst.msk [vmem:[%s2 + $0x50] sm:$0xff] %vm2699, %v2517
  %2711 = vst.msk [vmem:[%s2 + $0x58] sm:$0xff] %vm2699, %v2518
  %2712 = vst.msk [vmem:[%s2 + $0x60] sm:$0xff] %vm2699, %v2519
  %2713 = vst.msk [vmem:[%s2 + $0x68] sm:$0xff] %vm2699, %v2520
  %2714 = vst.msk [vmem:[%s2 + $0x70] sm:$0xff] %vm2699, %v2521
  %2715 = vst.msk [vmem:[%s2 + $0x78] sm:$0xff] %vm2699, %v2522
  %2716 = vst.msk [vmem:[%s2 + $0x80] sm:$0xff] %vm2699, %v2523
  %2717 = vst.msk [vmem:[%s2 + $0x88] sm:$0xff] %vm2699, %v2524
  %2718 = vst.msk [vmem:[%s2 + $0x90] sm:$0xff] %vm2699, %v2525
  %2719 = vst.msk [vmem:[%s2 + $0x98] sm:$0xff] %vm2699, %v2526
  %2720 = vst.msk [vmem:[%s2 + $0xa0] sm:$0xff] %vm2699, %v2527
  %2721 = vst.msk [vmem:[%s2 + $0xa8] sm:$0xff] %vm2699, %v2528
  %2722 = vst.msk [vmem:[%s2 + $0xb0] sm:$0xff] %vm2699, %v2529
  %2723 = vst.msk [vmem:[%s2 + $0xb8] sm:$0xff] %vm2699, %v2530
  %2724 = vst.msk [vmem:[%s2 + $0xc0] sm:$0xff] %vm2699, %v2531
  %2725 = vst.msk [vmem:[%s2 + $0xc8] sm:$0xff] %vm2699, %v2532
  %2726 = vst.msk [vmem:[%s2 + $0xd0] sm:$0xff] %vm2699, %v2533
  %2727 = vst.msk [vmem:[%s2 + $0xd8] sm:$0xff] %vm2699, %v2534
  %2728 = vst.msk [vmem:[%s2 + $0xe0] sm:$0xff] %vm2699, %v2535
  %2729 = vst.msk [vmem:[%s2 + $0xe8] sm:$0xff] %vm2699, %v2536
  %2730 = vst.msk [vmem:[%s2 + $0xf0] sm:$0xff] %vm2699, %v2537
  %2731 = vst.msk [vmem:[%s2 + $0xf8] sm:$0xff] %vm2699, %v2538
  %2732 = vst.msk [vmem:[%s2 + $0x100] sm:$0xff] %vm2699, %v2539
  %2733 = vst.msk [vmem:[%s2 + $0x108] sm:$0xff] %vm2699, %v2540
  %2734 = vst.msk [vmem:[%s2 + $0x110] sm:$0xff] %vm2699, %v2541
  %2735 = vst.msk [vmem:[%s2 + $0x118] sm:$0xff] %vm2699, %v2542
  %2736 = vst.msk [vmem:[%s2 + $0x120] sm:$0xff] %vm2699, %v2543
  %2737 = vst.msk [vmem:[%s2 + $0x128] sm:$0xff] %vm2699, %v2544
  %2738 = vst.msk [vmem:[%s2 + $0x130] sm:$0xff] %vm2699, %v2545
  %2739 = vst.msk [vmem:[%s2 + $0x138] sm:$0xff] %vm2699, %v2546
  %2740 = vst.msk [vmem:[%s2 + $0x140] sm:$0xff] %vm2699, %v2547
  %2741 = vst.msk [vmem:[%s2 + $0x148] sm:$0xff] %vm2699, %v2548
  %2742 = vst.msk [vmem:[%s2 + $0x150] sm:$0xff] %vm2699, %v2549
  %2743 = vst.msk [vmem:[%s2 + $0x158] sm:$0xff] %vm2699, %v2550
  %2744 = vst.msk [vmem:[%s2 + $0x160] sm:$0xff] %vm2699, %v2551
  %2745 = vst.msk [vmem:[%s2 + $0x168] sm:$0xff] %vm2699, %v2552
  %2746 = vst.msk [vmem:[%s2 + $0x170] sm:$0xff] %vm2699, %v2553
  %2747 = vst.msk [vmem:[%s2 + $0x178] sm:$0xff] %vm2699, %v2554
  %2748 = vst.msk [vmem:[%s2 + $0x180] sm:$0xff] %vm2699, %v2555
  %2749 = vst.msk [vmem:[%s2 + $0x188] sm:$0xff] %vm2699, %v2556
  %2750 = vst.msk [vmem:[%s2 + $0x190] sm:$0xff] %vm2699, %v2557
  %2751 = vst.msk [vmem:[%s2 + $0x198] sm:$0xff] %vm2699, %v2558
  %2752 = vst.msk [vmem:[%s2 + $0x1a0] sm:$0xff] %vm2699, %v2559
  %2753 = vst.msk [vmem:[%s2 + $0x1a8] sm:$0xff] %vm2699, %v2560
  %2754 = vst.msk [vmem:[%s2 + $0x1b0] sm:$0xff] %vm2699, %v2561
  %2755 = vst.msk [vmem:[%s2 + $0x1b8] sm:$0xff] %vm2699, %v2562
  %2756 = vst.msk [vmem:[%s2 + $0x1c0] sm:$0xff] %vm2699, %v2563
  %2757 = vst.msk [vmem:[%s2 + $0x1c8] sm:$0xff] %vm2699, %v2564
  %2758 = vst.msk [vmem:[%s2 + $0x1d0] sm:$0xff] %vm2699, %v2565
  %2759 = vst.msk [vmem:[%s2 + $0x1d8] sm:$0xff] %vm2699, %v2566
  %2760 = vst.msk [vmem:[%s2 + $0x1e0] sm:$0xff] %vm2699, %v2567
  %2761 = vst.msk [vmem:[%s2 + $0x1e8] sm:$0xff] %vm2699, %v2568
  %2762 = vst.msk [vmem:[%s2 + $0x1f0] sm:$0xff] %vm2699, %v2569
  %2763 = vst.msk [vmem:[%s2 + $0x1f8] sm:$0xff] %vm2699, %v2570
  %2764 = vst.msk [vmem:[%s2 + $0x200] sm:$0xff] %vm2699, %v2571
  %2765 = vst.msk [vmem:[%s2 + $0x208] sm:$0xff] %vm2699, %v2572
  %2766 = vst.msk [vmem:[%s2 + $0x210] sm:$0xff] %vm2699, %v2573
  %2767 = vst.msk [vmem:[%s2 + $0x218] sm:$0xff] %vm2699, %v2574
  %2768 = vst.msk [vmem:[%s2 + $0x220] sm:$0xff] %vm2699, %v2575
  %2769 = vst.msk [vmem:[%s2 + $0x228] sm:$0xff] %vm2699, %v2576
  %2770 = vst.msk [vmem:[%s2 + $0x230] sm:$0xff] %vm2699, %v2577
  %2771 = vst.msk [vmem:[%s2 + $0x238] sm:$0xff] %vm2699, %v2578
  %2772 = vst.msk [vmem:[%s2 + $0x240] sm:$0xff] %vm2699, %v2579
  %2773 = vst.msk [vmem:[%s2 + $0x248] sm:$0xff] %vm2699, %v2580
  %2774 = vst.msk [vmem:[%s2 + $0x250] sm:$0xff] %vm2699, %v2581
  %2775 = vst.msk [vmem:[%s2 + $0x258] sm:$0xff] %vm2699, %v2582
  %2776 = vst.msk [vmem:[%s2 + $0x260] sm:$0xff] %vm2699, %v2583
  %2777 = vst.msk [vmem:[%s2 + $0x268] sm:$0xff] %vm2699, %v2584
  %2778 = vst.msk [vmem:[%s2 + $0x270] sm:$0xff] %vm2699, %v2585
  %2779 = vst.msk [vmem:[%s2 + $0x278] sm:$0xff] %vm2699, %v2586
  %2780 = vst.msk [vmem:[%s2 + $0x280] sm:$0xff] %vm2699, %v2587
  %2781 = vst.msk [vmem:[%s2 + $0x288] sm:$0xff] %vm2699, %v2588
  %2782 = vst.msk [vmem:[%s2 + $0x290] sm:$0xff] %vm2699, %v2589
  %2783 = vst.msk [vmem:[%s2 + $0x298] sm:$0xff] %vm2699, %v2590
  %2784 = vst.msk [vmem:[%s2 + $0x2a0] sm:$0xff] %vm2699, %v2591
  %2785 = vst.msk [vmem:[%s2 + $0x2a8] sm:$0xff] %vm2699, %v2592
  %2786 = vst.msk [vmem:[%s2 + $0x2b0] sm:$0xff] %vm2699, %v2593
  %2787 = vst.msk [vmem:[%s2 + $0x2b8] sm:$0xff] %vm2699, %v2594
  %2788 = vst.msk [vmem:[%s2 + $0x2c0] sm:$0xff] %vm2699, %v2595
  %2789 = vst.msk [vmem:[%s2 + $0x2c8] sm:$0xff] %vm2699, %v2596
  %2790 = vst.msk [vmem:[%s2 + $0x2d0] sm:$0xff] %vm2699, %v2597
  %2791 = vst.msk [vmem:[%s2 + $0x2d8] sm:$0xff] %vm2699, %v2598
  %2792 = vst.msk [vmem:[%s2 + $0x2e0] sm:$0xff] %vm2699, %v2599
  %2793 = vst.msk [vmem:[%s2 + $0x2e8] sm:$0xff] %vm2699, %v2600
  %2794 = vst.msk [vmem:[%s2 + $0x2f0] sm:$0xff] %vm2699, %v2601
  %2795 = vst.msk [vmem:[%s2 + $0x2f8] sm:$0xff] %vm2699, %v2602
  %2796 = vst.msk [vmem:[%s2 + $0x300] sm:$0xff] %vm2699, %v2603
  %2797 = vst.msk [vmem:[%s2 + $0x308] sm:$0xff] %vm2699, %v2604
  %2798 = vst.msk [vmem:[%s2 + $0x310] sm:$0xff] %vm2699, %v2605
  %2799 = vst.msk [vmem:[%s2 + $0x318] sm:$0xff] %vm2699, %v2606
  %2800 = vst.msk [vmem:[%s2 + $0x320] sm:$0xff] %vm2699, %v2607
  %2801 = vst.msk [vmem:[%s2 + $0x328] sm:$0xff] %vm2699, %v2608
  %2802 = vst.msk [vmem:[%s2 + $0x330] sm:$0xff] %vm2699, %v2609
  %2803 = vst.msk [vmem:[%s2 + $0x338] sm:$0xff] %vm2699, %v2610
  %2804 = vst.msk [vmem:[%s2 + $0x340] sm:$0xff] %vm2699, %v2611
  %2805 = vst.msk [vmem:[%s2 + $0x348] sm:$0xff] %vm2699, %v2612
  %2806 = vst.msk [vmem:[%s2 + $0x350] sm:$0xff] %vm2699, %v2613
  %2807 = vst.msk [vmem:[%s2 + $0x358] sm:$0xff] %vm2699, %v2614
  %2808 = vst.msk [vmem:[%s2 + $0x360] sm:$0xff] %vm2699, %v2615
  %2809 = vst.msk [vmem:[%s2 + $0x368] sm:$0xff] %vm2699, %v2616
  %2810 = vst.msk [vmem:[%s2 + $0x370] sm:$0xff] %vm2699, %v2617
  %2811 = vst.msk [vmem:[%s2 + $0x378] sm:$0xff] %vm2699, %v2618
  %2812 = vst.msk [vmem:[%s2 + $0x380] sm:$0xff] %vm2699, %v2619
  %2813 = vst.msk [vmem:[%s2 + $0x388] sm:$0xff] %vm2699, %v2620
  %2814 = vst.msk [vmem:[%s2 + $0x390] sm:$0xff] %vm2699, %v2621
  %2815 = vst.msk [vmem:[%s2 + $0x398] sm:$0xff] %vm2699, %v2622
  %2816 = vst.msk [vmem:[%s2 + $0x3a0] sm:$0xff] %vm2699, %v2623
  %2817 = vst.msk [vmem:[%s2 + $0x3a8] sm:$0xff] %vm2699, %v2624
  %2818 = vst.msk [vmem:[%s2 + $0x3b0] sm:$0xff] %vm2699, %v2625
  %2819 = vst.msk [vmem:[%s2 + $0x3b8] sm:$0xff] %vm2699, %v2626
  %2820 = vst.msk [vmem:[%s2 + $0x3c0] sm:$0xff] %vm2699, %v2627
  %2821 = vst.msk [vmem:[%s2 + $0x3c8] sm:$0xff] %vm2699, %v2628
  %2822 = vst.msk [vmem:[%s2 + $0x3d0] sm:$0xff] %vm2699, %v2629
  %2823 = vst.msk [vmem:[%s2 + $0x3d8] sm:$0xff] %vm2699, %v2630
  %2824 = vst.msk [vmem:[%s2 + $0x3e0] sm:$0xff] %vm2699, %v2631
  %2825 = vst.msk [vmem:[%s2 + $0x3e8] sm:$0xff] %vm2699, %v2632
  %2826 = vst.msk [vmem:[%s2 + $0x3f0] sm:$0xff] %vm2699, %v2633
  %2827 = vst.msk [vmem:[%s2 + $0x3f8] sm:$0xff] %vm2699, %v2634
  %2828 = vst.msk [vmem:[%s2 + $0x400] sm:$0xff] %vm2699, %v2635
  %2829 = vst.msk [vmem:[%s2 + $0x408] sm:$0xff] %vm2699, %v2636
  %2830 = vst.msk [vmem:[%s2 + $0x410] sm:$0xff] %vm2699, %v2637
  %2831 = vst.msk [vmem:[%s2 + $0x418] sm:$0xff] %vm2699, %v2638
  %2832 = vst.msk [vmem:[%s2 + $0x420] sm:$0xff] %vm2699, %v2639
  %2833 = vst.msk [vmem:[%s2 + $0x428] sm:$0xff] %vm2699, %v2640
  %2834 = vst.msk [vmem:[%s2 + $0x430] sm:$0xff] %vm2699, %v2641
  %2835 = vst.msk [vmem:[%s2 + $0x438] sm:$0xff] %vm2699, %v2642
  %2836 = vst.msk [vmem:[%s2 + $0x440] sm:$0xff] %vm2699, %v2643
  %2837 = vst.msk [vmem:[%s2 + $0x448] sm:$0xff] %vm2699, %v2644
  %2838 = vst.msk [vmem:[%s2 + $0x450] sm:$0xff] %vm2699, %v2645
  %2839 = vst.msk [vmem:[%s2 + $0x458] sm:$0xff] %vm2699, %v2646
  %2840 = vst.msk [vmem:[%s2 + $0x460] sm:$0xff] %vm2699, %v2647
  %2841 = vst.msk [vmem:[%s2 + $0x468] sm:$0xff] %vm2699, %v2648
  %2842 = vst.msk [vmem:[%s2 + $0x470] sm:$0xff] %vm2699, %v2649
  %2843 = vst.msk [vmem:[%s2 + $0x478] sm:$0xff] %vm2699, %v2650
  %2844 = vst.msk [vmem:[%s2 + $0x480] sm:$0xff] %vm2699, %v2651
  %2845 = vst.msk [vmem:[%s2 + $0x488] sm:$0xff] %vm2699, %v2652
  %2846 = vst.msk [vmem:[%s2 + $0x490] sm:$0xff] %vm2699, %v2653
  %2847 = vst.msk [vmem:[%s2 + $0x498] sm:$0xff] %vm2699, %v2654
  %2848 = vst.msk [vmem:[%s2 + $0x4a0] sm:$0xff] %vm2699, %v2655
  %2849 = vst.msk [vmem:[%s2 + $0x4a8] sm:$0xff] %vm2699, %v2656
  %2850 = vst.msk [vmem:[%s2 + $0x4b0] sm:$0xff] %vm2699, %v2657
  %2851 = vst.msk [vmem:[%s2 + $0x4b8] sm:$0xff] %vm2699, %v2658
  %2852 = vst.msk [vmem:[%s2 + $0x4c0] sm:$0xff] %vm2699, %v2659
  %2853 = vst.msk [vmem:[%s2 + $0x4c8] sm:$0xff] %vm2699, %v2660
  %2854 = vst.msk [vmem:[%s2 + $0x4d0] sm:$0xff] %vm2699, %v2661
  %2855 = vst.msk [vmem:[%s2 + $0x4d8] sm:$0xff] %vm2699, %v2662
  %2856 = vst.msk [vmem:[%s2 + $0x4e0] sm:$0xff] %vm2699, %v2663
  %2857 = vst.msk [vmem:[%s2 + $0x4e8] sm:$0xff] %vm2699, %v2664
  %2858 = vst.msk [vmem:[%s2 + $0x4f0] sm:$0xff] %vm2699, %v2665
  %2859 = vst.msk [vmem:[%s2 + $0x4f8] sm:$0xff] %vm2699, %v2666
  %2860 = vst.msk [vmem:[%s2 + $0x500] sm:$0xff] %vm2699, %v2667
  %2861 = vst.msk [vmem:[%s2 + $0x508] sm:$0xff] %vm2699, %v2668
  %2862 = vst.msk [vmem:[%s2 + $0x510] sm:$0xff] %vm2699, %v2669
  %2863 = vst.msk [vmem:[%s2 + $0x518] sm:$0xff] %vm2699, %v2670
  %2864 = vst.msk [vmem:[%s2 + $0x520] sm:$0xff] %vm2699, %v2671
  %2865 = vst.msk [vmem:[%s2 + $0x528] sm:$0xff] %vm2699, %v2672
  %2866 = vst.msk [vmem:[%s2 + $0x530] sm:$0xff] %vm2699, %v2673
  %2867 = vst.msk [vmem:[%s2 + $0x538] sm:$0xff] %vm2699, %v2674
  %2868 = vst.msk [vmem:[%s2 + $0x540] sm:$0xff] %vm2699, %v2675
  %2869 = vst.msk [vmem:[%s2 + $0x548] sm:$0xff] %vm2699, %v2676
  %2870 = vst.msk [vmem:[%s2 + $0x550] sm:$0xff] %vm2699, %v2677
  %2871 = vst.msk [vmem:[%s2 + $0x558] sm:$0xff] %vm2699, %v2678
  %2872 = vst.msk [vmem:[%s2 + $0x560] sm:$0xff] %vm2699, %v2679
  %2873 = vst.msk [vmem:[%s2 + $0x568] sm:$0xff] %vm2699, %v2680
  %2874 = vst.msk [vmem:[%s2 + $0x570] sm:$0xff] %vm2699, %v2681
  %2875 = vst.msk [vmem:[%s2 + $0x578] sm:$0xff] %vm2699, %v2682
  %2876 = vst.msk [vmem:[%s2 + $0x580] sm:$0xff] %vm2699, %v2683
  %2877 = vst.msk [vmem:[%s2 + $0x588] sm:$0xff] %vm2699, %v2684
  %2878 = vst.msk [vmem:[%s2 + $0x590] sm:$0xff] %vm2699, %v2685
  %2879 = vst.msk [vmem:[%s2 + $0x598] sm:$0xff] %vm2699, %v2686
  %2880 = vst.msk [vmem:[%s2 + $0x5a0] sm:$0xff] %vm2699, %v2687
  %2881 = vst.msk [vmem:[%s2 + $0x5a8] sm:$0xff] %vm2699, %v2688
  %2882 = vst.msk [vmem:[%s2 + $0x5b0] sm:$0xff] %vm2699, %v2689
  %2883 = vst.msk [vmem:[%s2 + $0x5b8] sm:$0xff] %vm2699, %v2690
  %2884 = vst.msk [vmem:[%s2 + $0x5c0] sm:$0xff] %vm2699, %v2691
  %2885 = vst.msk [vmem:[%s2 + $0x5c8] sm:$0xff] %vm2699, %v2692
  %2886 = vst.msk [vmem:[%s2 + $0x5d0] sm:$0xff] %vm2699, %v2693
  %2887 = vst.msk [vmem:[%s2 + $0x5d8] sm:$0xff] %vm2699, %v2694
  %2888 = vst.msk [vmem:[%s2 + $0x5e0] sm:$0xff] %vm2699, %v2695
  %2889 = vst.msk [vmem:[%s2 + $0x5e8] sm:$0xff] %vm2699, %v2696
  %2890 = vst.msk [vmem:[%s2 + $0x5f0] sm:$0xff] %vm2699, %v2697
  %2891 = vst.msk [vmem:[%s2 + $0x5f8] sm:$0xff] %vm2699, %v2698
  // Predicated region
  $region10: #{tpu_custom_call.1} parent=0 // pred_check
    _
  $region11: #{tpu_custom_call.1} parent=0 // pred_check_branch
    %2893 = sbr.rel (0) target = $region13
  $region12: #{tpu_custom_call.1} parent=0 // pred_region
    _
  $region13: #{tpu_custom_call.1} parent=0 // pred_fallthru
    _
  // Predicated region
  $region14: #{tpu_custom_call.1} parent=0 // pred_check
    _
  $region15: #{tpu_custom_call.1} parent=0 // pred_check_branch
    %2895 = sbr.rel (0) target = $region17
  $region16: #{tpu_custom_call.1} parent=0 // pred_region
    _
  $region17: #{tpu_custom_call.1} parent=0 // pred_fallthru
    _

</llo_original>
